<compile_context>
chip_gen: v7x
topology: tpu7x:2x2x1
jax: 0.10.0
libtpu: 0.0.40
codegen_flags: <defaults>
</compile_context>

<pallas_src>
import jax
import jax.numpy as jnp
from jax.experimental import pallas as pl
from jax.experimental.pallas import tpu as pltpu

LANE = 128                 # vreg lane width: channel dims are padded to this
BF16 = jnp.bfloat16
F32 = jnp.float32


def _silu(x):
    return x * jax.nn.sigmoid(x)


def _round_up(n, m):
    return pl.cdiv(n, m) * m


def _pad2d(a, rows, cols):
    r, c = a.shape
    return jnp.pad(a, ((0, rows - r), (0, cols - c)))


def _pad3d(a, d0, d1, d2):
    s0, s1, s2 = a.shape
    return jnp.pad(a, ((0, d0 - s0), (0, d1 - s1), (0, d2 - s2)))


# ---------------------------------------------------------------------------
# Kernel 1: edge-level transform (fused)
#   act(down_proj(act(lin_kj(x)) * act(lin_rbf2(rbf))))
# The two K=H matmuls are fused into one full-width pass via a block-diagonal
# weight; the halves of the result are multiplied using a lane rotation.
# ---------------------------------------------------------------------------
def edge_kernel(x_ref, rbf_ref, w_edge_ref, b_edge_ref, w_down_ref, b_down_ref,
                out_ref):
    hidden = x_ref.shape[-1]
    xr = jnp.concatenate([x_ref[...], rbf_ref[...]], axis=1)          # (tm, 2H) f32
    t = jnp.dot(xr.astype(BF16), w_edge_ref[...],
                preferred_element_type=F32) + b_edge_ref[...]
    t = _silu(t)                                                      # [x_kj_act | rbf_act]
    # Rolling by H on a 2H-wide tile swaps the halves, so both halves of `h`
    # hold x_kj_act * rbf_act; rows [H:2H) of w_down are zero, so only one
    # copy feeds the down projection.
    h = t * pltpu.roll(t, shift=hidden, axis=1)
    y = jnp.dot(h.astype(BF16), w_down_ref[...],
                preferred_element_type=F32) + b_down_ref[...]
    out_ref[...] = _silu(y).astype(out_ref.dtype)                     # bf16, lane-dense


# ---------------------------------------------------------------------------
# Kernel 2: triplet-level transform
#   sbf -> act(lin_sbf1) -> act(lin_sbf2);  out = act(up_proj(x_kj[idx_kj] * sbf))
# ---------------------------------------------------------------------------
def triplet_kernel(xg_ref, sbf_ref, w_sbf1_ref, w_sbf2_ref, w_up_ref, b_up_ref,
                   out_ref):
    s = _silu(jnp.dot(sbf_ref[...].astype(BF16), w_sbf1_ref[...],
                      preferred_element_type=F32))
    s = _silu(jnp.dot(s.astype(BF16), w_sbf2_ref[...],
                      preferred_element_type=F32))
    h = xg_ref[...].astype(F32) * s          # elementwise stays in f32 (v5e-safe)
    y = jnp.dot(h.astype(BF16), w_up_ref[...],
                preferred_element_type=F32) + b_up_ref[...]
    out_ref[...] = _silu(y)                  # f32 (feeds the scatter-add)


# ---------------------------------------------------------------------------
# Kernel 3: num_before_skip ResidualLayers on the aggregated message, then skip
#   h = h + act(lin2(act(lin1(h))))   (L times);   out = h + x_ji
# ---------------------------------------------------------------------------
def residual_skip_kernel(msg_ref, xji_ref, w1_ref, b1_ref, w2_ref, b2_ref,
                         out_ref):
    h = msg_ref[...]
    num_layers = w1_ref.shape[0]
    for l in range(num_layers):              # static trip count, unrolled
        t = _silu(jnp.dot(h.astype(BF16), w1_ref[l],
                          preferred_element_type=F32) + b1_ref[l])
        t = _silu(jnp.dot(t.astype(BF16), w2_ref[l],
                          preferred_element_type=F32) + b2_ref[l])
        h = h + t
    out_ref[...] = h + xji_ref[...]


# ---------------------------------------------------------------------------
# Wrapper
# ---------------------------------------------------------------------------
def _row_spec(tm, f):
    return pl.BlockSpec((tm, f), lambda i: (i, 0))


def _const_spec(shape):
    nd = len(shape)
    return pl.BlockSpec(shape, lambda i: (0,) * nd)


def interaction_block_forward(params, x, rbf, sbf, idx_kj, idx_ji, *, tm=512):
    E, H = x.shape
    T, SR = sbf.shape
    B = params["W_down"].shape[1]
    assert B == H, "index_add_ in the reference requires num_bilinear == hidden_channels"
    L = params["W1"].shape[0]

    HP = _round_up(H, LANE)          # lane-dense channel widths
    BP = _round_up(B, LANE)
    H2 = 2 * H

    # Row tiles: large by default (amortize ~0.35us/step grid overhead and fill
    # the MXU), clamped for small problems, cdiv grid + zero row padding so no
    # tail rows are dropped.  Padded rows produce garbage that is sliced away.
    tm = max(16, _round_up(tm, 16))
    tm_e = min(tm, _round_up(E, 16))
    tm_t = min(tm, _round_up(T, 16))
    E_pad = _round_up(E, tm_e)
    T_pad = _round_up(T, tm_t)

    # --- parameter prep: pad to lane-dense widths, cast matmul weights to bf16.
    # Zero-padded weight columns + zero biases keep padded lanes exactly 0.
    W_edge = (jnp.zeros((H2, H2), F32)
              .at[:H, :H].set(params["W_kj"])
              .at[H:, H:].set(params["W_rbf"])).astype(BF16)       # blockdiag
    b_edge = jnp.concatenate([params["b_kj"], params["b_rbf"]], axis=1)  # (1, 2H)
    W_down2 = (jnp.zeros((H2, BP), F32)
               .at[:H, :B].set(params["W_down"])).astype(BF16)     # bottom half zero
    b_down = _pad2d(params["b_down"], 1, BP)
    W_sbf1 = _pad2d(params["W_sbf1"], SR, BP).astype(BF16)
    W_sbf2 = _pad2d(params["W_sbf2"], BP, BP).astype(BF16)
    W_up = _pad2d(params["W_up"], BP, HP).astype(BF16)
    b_up = _pad2d(params["b_up"], 1, HP)
    W1 = _pad3d(params["W1"], L, HP, HP).astype(BF16)
    b1 = _pad3d(params["b1"], L, 1, HP)
    W2 = _pad3d(params["W2"], L, HP, HP).astype(BF16)
    b2 = _pad3d(params["b2"], L, 1, HP)

    # --- activation prep (row padding only; cheap XLA pads)
    x_rows = _pad2d(x, E_pad, H)
    rbf_rows = _pad2d(rbf, E_pad, H)
    x_full = _pad2d(x, E_pad, HP)
    sbf_rows = _pad2d(sbf, T_pad, SR)
    idx_kj_pad = jnp.pad(idx_kj, (0, T_pad - T))   # padded rows gather row 0 (valid)

    cp = pltpu.CompilerParams(
        dimension_semantics=("parallel",),
        vmem_limit_bytes=48 * 1024 * 1024,  # below physical VMEM on v5e/v6e/v7x
    )

    # Weights use constant index maps; Pallas still double-buffers them, but the
    # whole padded bf16 weight set is < 0.5 MiB, so the 2x cost is negligible.
    # TODO(synk): pipeline_mode=pl.Buffered(1) would drop the second buffer.

    # --- kernel 1: per-edge (fused block-diagonal matmul) ---
    xkj_down = pl.pallas_call(
        edge_kernel,
        out_shape=jax.ShapeDtypeStruct((E_pad, BP), BF16),
        grid=(E_pad // tm_e,),
        in_specs=[
            _row_spec(tm_e, H),          # x
            _row_spec(tm_e, H),          # rbf
            _const_spec((H2, H2)),       # blockdiag(W_kj, W_rbf)   (bf16)
            _const_spec((1, H2)),        # [b_kj | b_rbf]
            _const_spec((H2, BP)),       # W_down on top half, zeros below (bf16)
            _const_spec((1, BP)),        # b_down (padded)
        ],
        out_specs=_row_spec(tm_e, BP),
        compiler_params=cp,
    )(x_rows, rbf_rows, W_edge, b_edge, W_down2, b_down)

    # --- gather (XLA glue) ---
    # TODO(synk): the data-dependent row gather / scatter-add stay in XLA.  A
    # fused per-row DMA gather (scalar-prefetched idx_kj + make_async_copy from
    # an ANY-space ref) would save one (T,128) HBM round trip but issues T tiny
    # 256 B descriptors, which costs roughly what it saves at this row width.
    xg = jnp.take(xkj_down, idx_kj_pad, axis=0)          # (T_pad, BP) bf16

    # --- kernel 2: per-triplet ---
    t_msg = pl.pallas_call(
        triplet_kernel,
        out_shape=jax.ShapeDtypeStruct((T_pad, HP), F32),
        grid=(T_pad // tm_t,),
        in_specs=[
            _row_spec(tm_t, BP),         # gathered x_kj (bf16)
            _row_spec(tm_t, SR),         # sbf
            _const_spec((SR, BP)),       # W_sbf1 (bf16)
            _const_spec((BP, BP)),       # W_sbf2 (bf16)
            _const_spec((BP, HP)),       # W_up   (bf16)
            _const_spec((1, HP)),        # b_up
        ],
        out_specs=_row_spec(tm_t, HP),
        compiler_params=cp,
    )(xg, sbf_rows, W_sbf1, W_sbf2, W_up, b_up)

    # --- scatter-add: message = zeros(E, B).index_add_(0, idx_ji, x_kj) ---
    message = jnp.zeros((E_pad, HP), F32).at[idx_ji].add(t_msg[:T])

    # --- kernel 3: residual layers + skip connection ---
    out = pl.pallas_call(
        residual_skip_kernel,
        out_shape=jax.ShapeDtypeStruct((E_pad, HP), F32),
        grid=(E_pad // tm_e,),
        in_specs=[
            _row_spec(tm_e, HP),         # message
            _row_spec(tm_e, HP),         # x_ji (padded)
            _const_spec((L, HP, HP)),    # W1 stack (bf16)
            _const_spec((L, 1, HP)),     # b1 stack
            _const_spec((L, HP, HP)),    # W2 stack (bf16)
            _const_spec((L, 1, HP)),     # b2 stack
        ],
        out_specs=_row_spec(tm_e, HP),
        compiler_params=cp,
    )(message, x_full, W1, b1, W2, b2)

    return out[:E, :H]


# ---------------------------------------------------------------------------
# Pure-JAX f32 reference (mirrors the PyTorch forward exactly)
# ---------------------------------------------------------------------------
def reference_forward(params, x, rbf, sbf, idx_kj, idx_ji):
    E, H = x.shape
    B = params["W_down"].shape[1]
    x_ji = x
    x_kj = _silu(x @ params["W_kj"] + params["b_kj"])
    rbf2 = _silu(rbf @ params["W_rbf"] + params["b_rbf"])
    x_kj = x_kj * rbf2
    x_kj = _silu(x_kj @ params["W_down"] + params["b_down"])
    x_kj = x_kj[idx_kj]
    s = _silu(sbf @ params["W_sbf1"])
    s = _silu(s @ params["W_sbf2"])
    x_kj = x_kj * s
    x_kj = _silu(x_kj @ params["W_up"] + params["b_up"])
    message = jnp.zeros((E, B), jnp.float32).at[idx_ji].add(x_kj)
    h = message
    for l in range(params["W1"].shape[0]):
        t = _silu(h @ params["W1"][l] + params["b1"][l])
        t = _silu(t @ params["W2"][l] + params["b2"][l])
        h = h + t
    return h + x_ji


# ---------------------------------------------------------------------------
# Deterministic parameter construction (shapes from __init__)
# ---------------------------------------------------------------------------
def make_params(key, hidden, num_bilinear, num_spherical, num_radial,
                num_before_skip):
    sr = num_spherical * num_radial
    keys = jax.random.split(key, 16)

    def u(k, shape, fan_in):
        bound = 1.0 / jnp.sqrt(fan_in)
        return jax.random.uniform(k, shape, jnp.float32, -bound, bound)

    return dict(
        # weights stored as [in, out] (transposed vs. PyTorch)
        W_kj=u(keys[0], (hidden, hidden), hidden),
        b_kj=u(keys[1], (1, hidden), hidden),
        W_rbf=u(keys[2], (hidden, hidden), hidden),
        b_rbf=u(keys[3], (1, hidden), hidden),
        W_down=u(keys[4], (hidden, num_bilinear), hidden),
        b_down=u(keys[5], (1, num_bilinear), hidden),
        W_sbf1=u(keys[6], (sr, num_bilinear), sr),                      # bias=False
        W_sbf2=u(keys[7], (num_bilinear, num_bilinear), num_bilinear),  # bias=False
        W_up=u(keys[8], (num_bilinear, hidden), num_bilinear),
        b_up=u(keys[9], (1, hidden), num_bilinear),
        W1=u(keys[10], (num_before_skip, hidden, hidden), hidden),
        b1=u(keys[11], (num_before_skip, 1, hidden), hidden),
        W2=u(keys[12], (num_before_skip, hidden, hidden), hidden),
        b2=u(keys[13], (num_before_skip, 1, hidden), hidden),
    )


if __name__ == "__main__":
    # Small, module-consistent shapes.
    hidden_channels = 64
    num_bilinear = 64          # must equal hidden_channels (see note above)
    num_spherical = 4
    num_radial = 8
    num_before_skip = 2
    E = 64                     # number of edges
    T = 128                    # number of triplets

    key = jax.random.PRNGKey(0)
    kp, kx, kr, ks, kkj, kji = jax.random.split(key, 6)

    params = make_params(kp, hidden_channels, num_bilinear, num_spherical,
                         num_radial, num_before_skip)

    x = jax.random.normal(kx, (E, hidden_channels), jnp.float32)
    rbf = jax.random.normal(kr, (E, hidden_channels), jnp.float32)
    sbf = jax.random.normal(ks, (T, num_spherical * num_radial), jnp.float32)
    idx_kj = jax.random.randint(kkj, (T,), 0, E, jnp.int32)
    idx_ji = jax.random.randint(kji, (T,), 0, E, jnp.int32)

    fwd = jax.jit(interaction_block_forward)
    out = jax.block_until_ready(fwd(params, x, rbf, sbf, idx_kj, idx_ji))
    ref = jax.block_until_ready(
        reference_forward(params, x, rbf, sbf, idx_kj, idx_ji))

    assert out.shape == (E, hidden_channels)
    max_err = float(jnp.max(jnp.abs(out - ref)))
    mean_err = float(jnp.mean(jnp.abs(out - ref)))
    # bf16 matmul inputs vs. a pure-f32 reference -> loosened tolerance.
    assert jnp.allclose(out, ref, atol=1e-1, rtol=1e-1), (max_err, mean_err)
    assert mean_err < 2e-2, (max_err, mean_err)
    print("KERNEL_OK")
</pallas_src>

<mosaic_0001>
module attributes {stable_mosaic.version = 11 : i64} {
  func.func @edge_kernel(%arg0: i32, %arg1: memref<64x64xf32, #tpu.memory_space<vmem>>, %arg2: memref<64x64xf32, #tpu.memory_space<vmem>>, %arg3: memref<128x128xbf16, #tpu.memory_space<vmem>>, %arg4: memref<1x128xf32, #tpu.memory_space<vmem>>, %arg5: memref<128x128xbf16, #tpu.memory_space<vmem>>, %arg6: memref<1x128xf32, #tpu.memory_space<vmem>>, %arg7: memref<64x128xbf16, #tpu.memory_space<vmem>>) attributes {dimension_semantics = [#tpu.dimension_semantics<parallel>], iteration_bounds = array<i64: 1>, scalar_prefetch = 0 : i64, scratch_operands = 0 : i64, tpu.core_type = #tpu.core_type<tc>, window_params = [{transform_indices = @transform_0, window_bounds = array<i64: 64, 64>}, {transform_indices = @transform_1, window_bounds = array<i64: 64, 64>}, {pipeline_mode = #tpu.pipeline_mode<synchronous>, transform_indices = @transform_2, window_bounds = array<i64: 128, 128>}, {pipeline_mode = #tpu.pipeline_mode<synchronous>, transform_indices = @transform_3, window_bounds = array<i64: 1, 128>}, {pipeline_mode = #tpu.pipeline_mode<synchronous>, transform_indices = @transform_4, window_bounds = array<i64: 128, 128>}, {pipeline_mode = #tpu.pipeline_mode<synchronous>, transform_indices = @transform_5, window_bounds = array<i64: 1, 128>}, {transform_indices = @transform_6, window_bounds = array<i64: 64, 128>}]} {
    %c0 = arith.constant 0 : index
    %c0_0 = arith.constant 0 : index
    %0 = vector.load %arg1[%c0, %c0_0] : memref<64x64xf32, #tpu.memory_space<vmem>>, vector<64x64xf32>
    %c0_1 = arith.constant 0 : index
    %c0_2 = arith.constant 0 : index
    %1 = vector.load %arg2[%c0_1, %c0_2] : memref<64x64xf32, #tpu.memory_space<vmem>>, vector<64x64xf32>
    %2 = tpu.concatenate %0, %1 in 1 : vector<64x64xf32>, vector<64x64xf32> -> vector<64x128xf32>
    %3 = arith.truncf %2 : vector<64x128xf32> to vector<64x128xbf16>
    %c0_3 = arith.constant 0 : index
    %c0_4 = arith.constant 0 : index
    %4 = vector.load %arg3[%c0_3, %c0_4] : memref<128x128xbf16, #tpu.memory_space<vmem>>, vector<128x128xbf16>
    %cst = arith.constant dense<0.000000e+00> : vector<64x128xf32>
    %5 = tpu.matmul %3, %4, %cst {dimension_numbers = #tpu.dot_dimension_numbers<[1], [0], [0], [1], [0, 0, 1, 1], [], []>} : vector<64x128xbf16>, vector<128x128xbf16>, vector<64x128xf32> -> vector<64x128xf32>
    %c0_5 = arith.constant 0 : index
    %c0_6 = arith.constant 0 : index
    %6 = vector.load %arg4[%c0_5, %c0_6] : memref<1x128xf32, #tpu.memory_space<vmem>>, vector<1x128xf32>
    %7 = vector.broadcast %6 : vector<1x128xf32> to vector<64x128xf32>
    %8 = arith.addf %5, %7 : vector<64x128xf32>
    %9 = arith.negf %8 : vector<64x128xf32>
    %10 = math.exp %9 : vector<64x128xf32>
    %cst_7 = arith.constant 1.000000e+00 : f32
    %11 = vector.broadcast %cst_7 : f32 to vector<64x128xf32>
    %12 = arith.addf %11, %10 : vector<64x128xf32>
    %13 = arith.divf %11, %12 : vector<64x128xf32>
    %14 = arith.mulf %8, %13 : vector<64x128xf32>
    %c64_i32 = arith.constant 64 : i32
    %15 = tpu.dynamic_rotate %14 by %c64_i32 dim 1 : vector<64x128xf32>, i32 -> vector<64x128xf32>
    %16 = arith.mulf %14, %15 : vector<64x128xf32>
    %17 = arith.truncf %16 : vector<64x128xf32> to vector<64x128xbf16>
    %c0_8 = arith.constant 0 : index
    %c0_9 = arith.constant 0 : index
    %18 = vector.load %arg5[%c0_8, %c0_9] : memref<128x128xbf16, #tpu.memory_space<vmem>>, vector<128x128xbf16>
    %cst_10 = arith.constant dense<0.000000e+00> : vector<64x128xf32>
    %19 = tpu.matmul %17, %18, %cst_10 {dimension_numbers = #tpu.dot_dimension_numbers<[1], [0], [0], [1], [0, 0, 1, 1], [], []>} : vector<64x128xbf16>, vector<128x128xbf16>, vector<64x128xf32> -> vector<64x128xf32>
    %c0_11 = arith.constant 0 : index
    %c0_12 = arith.constant 0 : index
    %20 = vector.load %arg6[%c0_11, %c0_12] : memref<1x128xf32, #tpu.memory_space<vmem>>, vector<1x128xf32>
    %21 = vector.broadcast %20 : vector<1x128xf32> to vector<64x128xf32>
    %22 = arith.addf %19, %21 : vector<64x128xf32>
    %23 = arith.negf %22 : vector<64x128xf32>
    %24 = math.exp %23 : vector<64x128xf32>
    %cst_13 = arith.constant 1.000000e+00 : f32
    %25 = vector.broadcast %cst_13 : f32 to vector<64x128xf32>
    %26 = arith.addf %25, %24 : vector<64x128xf32>
    %27 = arith.divf %25, %26 : vector<64x128xf32>
    %28 = arith.mulf %22, %27 : vector<64x128xf32>
    %29 = arith.truncf %28 : vector<64x128xf32> to vector<64x128xbf16>
    %c0_14 = arith.constant 0 : index
    %c0_15 = arith.constant 0 : index
    %30 = vector.load %arg7[%c0_14, %c0_15] : memref<64x128xbf16, #tpu.memory_space<vmem>>, vector<64x128xbf16>
    tpu.vector_store %arg7[%c0_14, %c0_15], %29 {strides = array<i32>} : memref<64x128xbf16, #tpu.memory_space<vmem>>, vector<64x128xbf16>,
    return
  }
  func.func @transform_0(%arg0: i32) -> (i32, i32) {
    %c0_i32 = arith.constant 0 : i32
    %c0_i32_0 = arith.constant 0 : i32
    return %arg0, %c0_i32 : i32, i32
  }
  func.func @transform_1(%arg0: i32) -> (i32, i32) {
    %c0_i32 = arith.constant 0 : i32
    %c0_i32_0 = arith.constant 0 : i32
    return %arg0, %c0_i32 : i32, i32
  }
  func.func @transform_2(%arg0: i32) -> (i32, i32) {
    %c0_i32 = arith.constant 0 : i32
    %c0_i32_0 = arith.constant 0 : i32
    %c0_i32_1 = arith.constant 0 : i32
    return %c0_i32, %c0_i32_0 : i32, i32
  }
  func.func @transform_3(%arg0: i32) -> (i32, i32) {
    %c0_i32 = arith.constant 0 : i32
    %c0_i32_0 = arith.constant 0 : i32
    %c0_i32_1 = arith.constant 0 : i32
    return %c0_i32, %c0_i32_0 : i32, i32
  }
  func.func @transform_4(%arg0: i32) -> (i32, i32) {
    %c0_i32 = arith.constant 0 : i32
    %c0_i32_0 = arith.constant 0 : i32
    %c0_i32_1 = arith.constant 0 : i32
    return %c0_i32, %c0_i32_0 : i32, i32
  }
  func.func @transform_5(%arg0: i32) -> (i32, i32) {
    %c0_i32 = arith.constant 0 : i32
    %c0_i32_0 = arith.constant 0 : i32
    %c0_i32_1 = arith.constant 0 : i32
    return %c0_i32, %c0_i32_0 : i32, i32
  }
  func.func @transform_6(%arg0: i32) -> (i32, i32) {
    %c0_i32 = arith.constant 0 : i32
    %c0_i32_0 = arith.constant 0 : i32
    return %arg0, %c0_i32 : i32, i32
  }
}

module attributes {stable_mosaic.version = 11 : i64} {
  func.func @triplet_kernel(%arg0: i32, %arg1: memref<128x128xbf16, #tpu.memory_space<vmem>>, %arg2: memref<128x32xf32, #tpu.memory_space<vmem>>, %arg3: memref<32x128xbf16, #tpu.memory_space<vmem>>, %arg4: memref<128x128xbf16, #tpu.memory_space<vmem>>, %arg5: memref<128x128xbf16, #tpu.memory_space<vmem>>, %arg6: memref<1x128xf32, #tpu.memory_space<vmem>>, %arg7: memref<128x128xf32, #tpu.memory_space<vmem>>) attributes {dimension_semantics = [#tpu.dimension_semantics<parallel>], iteration_bounds = array<i64: 1>, scalar_prefetch = 0 : i64, scratch_operands = 0 : i64, tpu.core_type = #tpu.core_type<tc>, window_params = [{transform_indices = @transform_0, window_bounds = array<i64: 128, 128>}, {transform_indices = @transform_1, window_bounds = array<i64: 128, 32>}, {pipeline_mode = #tpu.pipeline_mode<synchronous>, transform_indices = @transform_2, window_bounds = array<i64: 32, 128>}, {pipeline_mode = #tpu.pipeline_mode<synchronous>, transform_indices = @transform_3, window_bounds = array<i64: 128, 128>}, {pipeline_mode = #tpu.pipeline_mode<synchronous>, transform_indices = @transform_4, window_bounds = array<i64: 128, 128>}, {pipeline_mode = #tpu.pipeline_mode<synchronous>, transform_indices = @transform_5, window_bounds = array<i64: 1, 128>}, {transform_indices = @transform_6, window_bounds = array<i64: 128, 128>}]} {
    %c0 = arith.constant 0 : index
    %c0_0 = arith.constant 0 : index
    %0 = vector.load %arg2[%c0, %c0_0] : memref<128x32xf32, #tpu.memory_space<vmem>>, vector<128x32xf32>
    %1 = arith.truncf %0 : vector<128x32xf32> to vector<128x32xbf16>
    %c0_1 = arith.constant 0 : index
    %c0_2 = arith.constant 0 : index
    %2 = vector.load %arg3[%c0_1, %c0_2] : memref<32x128xbf16, #tpu.memory_space<vmem>>, vector<32x128xbf16>
    %cst = arith.constant dense<0.000000e+00> : vector<128x128xf32>
    %3 = tpu.matmul %1, %2, %cst {dimension_numbers = #tpu.dot_dimension_numbers<[1], [0], [0], [1], [0, 0, 1, 1], [], []>} : vector<128x32xbf16>, vector<32x128xbf16>, vector<128x128xf32> -> vector<128x128xf32>
    %4 = arith.negf %3 : vector<128x128xf32>
    %5 = math.exp %4 : vector<128x128xf32>
    %cst_3 = arith.constant 1.000000e+00 : f32
    %6 = vector.broadcast %cst_3 : f32 to vector<128x128xf32>
    %7 = arith.addf %6, %5 : vector<128x128xf32>
    %8 = arith.divf %6, %7 : vector<128x128xf32>
    %9 = arith.mulf %3, %8 : vector<128x128xf32>
    %10 = arith.truncf %9 : vector<128x128xf32> to vector<128x128xbf16>
    %c0_4 = arith.constant 0 : index
    %c0_5 = arith.constant 0 : index
    %11 = vector.load %arg4[%c0_4, %c0_5] : memref<128x128xbf16, #tpu.memory_space<vmem>>, vector<128x128xbf16>
    %cst_6 = arith.constant dense<0.000000e+00> : vector<128x128xf32>
    %12 = tpu.matmul %10, %11, %cst_6 {dimension_numbers = #tpu.dot_dimension_numbers<[1], [0], [0], [1], [0, 0, 1, 1], [], []>} : vector<128x128xbf16>, vector<128x128xbf16>, vector<128x128xf32> -> vector<128x128xf32>
    %13 = arith.negf %12 : vector<128x128xf32>
    %14 = math.exp %13 : vector<128x128xf32>
    %cst_7 = arith.constant 1.000000e+00 : f32
    %15 = vector.broadcast %cst_7 : f32 to vector<128x128xf32>
    %16 = arith.addf %15, %14 : vector<128x128xf32>
    %17 = arith.divf %15, %16 : vector<128x128xf32>
    %18 = arith.mulf %12, %17 : vector<128x128xf32>
    %c0_8 = arith.constant 0 : index
    %c0_9 = arith.constant 0 : index
    %19 = vector.load %arg1[%c0_8, %c0_9] : memref<128x128xbf16, #tpu.memory_space<vmem>>, vector<128x128xbf16>
    %20 = arith.extf %19 : vector<128x128xbf16> to vector<128x128xf32>
    %21 = arith.mulf %20, %18 : vector<128x128xf32>
    %22 = arith.truncf %21 : vector<128x128xf32> to vector<128x128xbf16>
    %c0_10 = arith.constant 0 : index
    %c0_11 = arith.constant 0 : index
    %23 = vector.load %arg5[%c0_10, %c0_11] : memref<128x128xbf16, #tpu.memory_space<vmem>>, vector<128x128xbf16>
    %cst_12 = arith.constant dense<0.000000e+00> : vector<128x128xf32>
    %24 = tpu.matmul %22, %23, %cst_12 {dimension_numbers = #tpu.dot_dimension_numbers<[1], [0], [0], [1], [0, 0, 1, 1], [], []>} : vector<128x128xbf16>, vector<128x128xbf16>, vector<128x128xf32> -> vector<128x128xf32>
    %c0_13 = arith.constant 0 : index
    %c0_14 = arith.constant 0 : index
    %25 = vector.load %arg6[%c0_13, %c0_14] : memref<1x128xf32, #tpu.memory_space<vmem>>, vector<1x128xf32>
    %26 = vector.broadcast %25 : vector<1x128xf32> to vector<128x128xf32>
    %27 = arith.addf %24, %26 : vector<128x128xf32>
    %28 = arith.negf %27 : vector<128x128xf32>
    %29 = math.exp %28 : vector<128x128xf32>
    %cst_15 = arith.constant 1.000000e+00 : f32
    %30 = vector.broadcast %cst_15 : f32 to vector<128x128xf32>
    %31 = arith.addf %30, %29 : vector<128x128xf32>
    %32 = arith.divf %30, %31 : vector<128x128xf32>
    %33 = arith.mulf %27, %32 : vector<128x128xf32>
    %c0_16 = arith.constant 0 : index
    %c0_17 = arith.constant 0 : index
    %34 = vector.load %arg7[%c0_16, %c0_17] : memref<128x128xf32, #tpu.memory_space<vmem>>, vector<128x128xf32>
    tpu.vector_store %arg7[%c0_16, %c0_17], %33 {strides = array<i32>} : memref<128x128xf32, #tpu.memory_space<vmem>>, vector<128x128xf32>,
    return
  }
  func.func @transform_0(%arg0: i32) -> (i32, i32) {
    %c0_i32 = arith.constant 0 : i32
    %c0_i32_0 = arith.constant 0 : i32
    return %arg0, %c0_i32 : i32, i32
  }
  func.func @transform_1(%arg0: i32) -> (i32, i32) {
    %c0_i32 = arith.constant 0 : i32
    %c0_i32_0 = arith.constant 0 : i32
    return %arg0, %c0_i32 : i32, i32
  }
  func.func @transform_2(%arg0: i32) -> (i32, i32) {
    %c0_i32 = arith.constant 0 : i32
    %c0_i32_0 = arith.constant 0 : i32
    %c0_i32_1 = arith.constant 0 : i32
    return %c0_i32, %c0_i32_0 : i32, i32
  }
  func.func @transform_3(%arg0: i32) -> (i32, i32) {
    %c0_i32 = arith.constant 0 : i32
    %c0_i32_0 = arith.constant 0 : i32
    %c0_i32_1 = arith.constant 0 : i32
    return %c0_i32, %c0_i32_0 : i32, i32
  }
  func.func @transform_4(%arg0: i32) -> (i32, i32) {
    %c0_i32 = arith.constant 0 : i32
    %c0_i32_0 = arith.constant 0 : i32
    %c0_i32_1 = arith.constant 0 : i32
    return %c0_i32, %c0_i32_0 : i32, i32
  }
  func.func @transform_5(%arg0: i32) -> (i32, i32) {
    %c0_i32 = arith.constant 0 : i32
    %c0_i32_0 = arith.constant 0 : i32
    %c0_i32_1 = arith.constant 0 : i32
    return %c0_i32, %c0_i32_0 : i32, i32
  }
  func.func @transform_6(%arg0: i32) -> (i32, i32) {
    %c0_i32 = arith.constant 0 : i32
    %c0_i32_0 = arith.constant 0 : i32
    return %arg0, %c0_i32 : i32, i32
  }
}

module attributes {stable_mosaic.version = 11 : i64} {
  func.func @residual_skip_kernel(%arg0: i32, %arg1: memref<64x128xf32, #tpu.memory_space<vmem>>, %arg2: memref<64x128xf32, #tpu.memory_space<vmem>>, %arg3: memref<2x128x128xbf16, #tpu.memory_space<vmem>>, %arg4: memref<2x1x128xf32, #tpu.memory_space<vmem>>, %arg5: memref<2x128x128xbf16, #tpu.memory_space<vmem>>, %arg6: memref<2x1x128xf32, #tpu.memory_space<vmem>>, %arg7: memref<64x128xf32, #tpu.memory_space<vmem>>) attributes {dimension_semantics = [#tpu.dimension_semantics<parallel>], iteration_bounds = array<i64: 1>, scalar_prefetch = 0 : i64, scratch_operands = 0 : i64, tpu.core_type = #tpu.core_type<tc>, window_params = [{transform_indices = @transform_0, window_bounds = array<i64: 64, 128>}, {transform_indices = @transform_1, window_bounds = array<i64: 64, 128>}, {pipeline_mode = #tpu.pipeline_mode<synchronous>, transform_indices = @transform_2, window_bounds = array<i64: 2, 128, 128>}, {pipeline_mode = #tpu.pipeline_mode<synchronous>, transform_indices = @transform_3, window_bounds = array<i64: 2, 1, 128>}, {pipeline_mode = #tpu.pipeline_mode<synchronous>, transform_indices = @transform_4, window_bounds = array<i64: 2, 128, 128>}, {pipeline_mode = #tpu.pipeline_mode<synchronous>, transform_indices = @transform_5, window_bounds = array<i64: 2, 1, 128>}, {transform_indices = @transform_6, window_bounds = array<i64: 64, 128>}]} {
    %c0 = arith.constant 0 : index
    %c0_0 = arith.constant 0 : index
    %0 = vector.load %arg1[%c0, %c0_0] : memref<64x128xf32, #tpu.memory_space<vmem>>, vector<64x128xf32>
    %1 = arith.truncf %0 : vector<64x128xf32> to vector<64x128xbf16>
    %c0_1 = arith.constant 0 : index
    %c0_2 = arith.constant 0 : index
    %c0_3 = arith.constant 0 : index
    %2 = vector.load %arg3[%c0_1, %c0_2, %c0_3] : memref<2x128x128xbf16, #tpu.memory_space<vmem>>, vector<1x128x128xbf16>
    %3 = vector.shape_cast %2 : vector<1x128x128xbf16> to vector<128x128xbf16>
    %cst = arith.constant dense<0.000000e+00> : vector<64x128xf32>
    %4 = tpu.matmul %1, %3, %cst {dimension_numbers = #tpu.dot_dimension_numbers<[1], [0], [0], [1], [0, 0, 1, 1], [], []>} : vector<64x128xbf16>, vector<128x128xbf16>, vector<64x128xf32> -> vector<64x128xf32>
    %c0_4 = arith.constant 0 : index
    %c0_5 = arith.constant 0 : index
    %c0_6 = arith.constant 0 : index
    %5 = vector.load %arg4[%c0_4, %c0_5, %c0_6] : memref<2x1x128xf32, #tpu.memory_space<vmem>>, vector<1x1x128xf32>
    %6 = vector.shape_cast %5 : vector<1x1x128xf32> to vector<1x128xf32>
    %7 = vector.broadcast %6 : vector<1x128xf32> to vector<64x128xf32>
    %8 = arith.addf %4, %7 : vector<64x128xf32>
    %9 = arith.negf %8 : vector<64x128xf32>
    %10 = math.exp %9 : vector<64x128xf32>
    %cst_7 = arith.constant 1.000000e+00 : f32
    %11 = vector.broadcast %cst_7 : f32 to vector<64x128xf32>
    %12 = arith.addf %11, %10 : vector<64x128xf32>
    %13 = arith.divf %11, %12 : vector<64x128xf32>
    %14 = arith.mulf %8, %13 : vector<64x128xf32>
    %15 = arith.truncf %14 : vector<64x128xf32> to vector<64x128xbf16>
    %c0_8 = arith.constant 0 : index
    %c0_9 = arith.constant 0 : index
    %c0_10 = arith.constant 0 : index
    %16 = vector.load %arg5[%c0_8, %c0_9, %c0_10] : memref<2x128x128xbf16, #tpu.memory_space<vmem>>, vector<1x128x128xbf16>
    %17 = vector.shape_cast %16 : vector<1x128x128xbf16> to vector<128x128xbf16>
    %cst_11 = arith.constant dense<0.000000e+00> : vector<64x128xf32>
    %18 = tpu.matmul %15, %17, %cst_11 {dimension_numbers = #tpu.dot_dimension_numbers<[1], [0], [0], [1], [0, 0, 1, 1], [], []>} : vector<64x128xbf16>, vector<128x128xbf16>, vector<64x128xf32> -> vector<64x128xf32>
    %c0_12 = arith.constant 0 : index
    %c0_13 = arith.constant 0 : index
    %c0_14 = arith.constant 0 : index
    %19 = vector.load %arg6[%c0_12, %c0_13, %c0_14] : memref<2x1x128xf32, #tpu.memory_space<vmem>>, vector<1x1x128xf32>
    %20 = vector.shape_cast %19 : vector<1x1x128xf32> to vector<1x128xf32>
    %21 = vector.broadcast %20 : vector<1x128xf32> to vector<64x128xf32>
    %22 = arith.addf %18, %21 : vector<64x128xf32>
    %23 = arith.negf %22 : vector<64x128xf32>
    %24 = math.exp %23 : vector<64x128xf32>
    %cst_15 = arith.constant 1.000000e+00 : f32
    %25 = vector.broadcast %cst_15 : f32 to vector<64x128xf32>
    %26 = arith.addf %25, %24 : vector<64x128xf32>
    %27 = arith.divf %25, %26 : vector<64x128xf32>
    %28 = arith.mulf %22, %27 : vector<64x128xf32>
    %29 = arith.addf %0, %28 : vector<64x128xf32>
    %30 = arith.truncf %29 : vector<64x128xf32> to vector<64x128xbf16>
    %c1 = arith.constant 1 : index
    %c0_16 = arith.constant 0 : index
    %c0_17 = arith.constant 0 : index
    %31 = vector.load %arg3[%c1, %c0_16, %c0_17] : memref<2x128x128xbf16, #tpu.memory_space<vmem>>, vector<1x128x128xbf16>
    %32 = vector.shape_cast %31 : vector<1x128x128xbf16> to vector<128x128xbf16>
    %cst_18 = arith.constant dense<0.000000e+00> : vector<64x128xf32>
    %33 = tpu.matmul %30, %32, %cst_18 {dimension_numbers = #tpu.dot_dimension_numbers<[1], [0], [0], [1], [0, 0, 1, 1], [], []>} : vector<64x128xbf16>, vector<128x128xbf16>, vector<64x128xf32> -> vector<64x128xf32>
    %c1_19 = arith.constant 1 : index
    %c0_20 = arith.constant 0 : index
    %c0_21 = arith.constant 0 : index
    %34 = vector.load %arg4[%c1_19, %c0_20, %c0_21] : memref<2x1x128xf32, #tpu.memory_space<vmem>>, vector<1x1x128xf32>
    %35 = vector.shape_cast %34 : vector<1x1x128xf32> to vector<1x128xf32>
    %36 = vector.broadcast %35 : vector<1x128xf32> to vector<64x128xf32>
    %37 = arith.addf %33, %36 : vector<64x128xf32>
    %38 = arith.negf %37 : vector<64x128xf32>
    %39 = math.exp %38 : vector<64x128xf32>
    %cst_22 = arith.constant 1.000000e+00 : f32
    %40 = vector.broadcast %cst_22 : f32 to vector<64x128xf32>
    %41 = arith.addf %40, %39 : vector<64x128xf32>
    %42 = arith.divf %40, %41 : vector<64x128xf32>
    %43 = arith.mulf %37, %42 : vector<64x128xf32>
    %44 = arith.truncf %43 : vector<64x128xf32> to vector<64x128xbf16>
    %c1_23 = arith.constant 1 : index
    %c0_24 = arith.constant 0 : index
    %c0_25 = arith.constant 0 : index
    %45 = vector.load %arg5[%c1_23, %c0_24, %c0_25] : memref<2x128x128xbf16, #tpu.memory_space<vmem>>, vector<1x128x128xbf16>
    %46 = vector.shape_cast %45 : vector<1x128x128xbf16> to vector<128x128xbf16>
    %cst_26 = arith.constant dense<0.000000e+00> : vector<64x128xf32>
    %47 = tpu.matmul %44, %46, %cst_26 {dimension_numbers = #tpu.dot_dimension_numbers<[1], [0], [0], [1], [0, 0, 1, 1], [], []>} : vector<64x128xbf16>, vector<128x128xbf16>, vector<64x128xf32> -> vector<64x128xf32>
    %c1_27 = arith.constant 1 : index
    %c0_28 = arith.constant 0 : index
    %c0_29 = arith.constant 0 : index
    %48 = vector.load %arg6[%c1_27, %c0_28, %c0_29] : memref<2x1x128xf32, #tpu.memory_space<vmem>>, vector<1x1x128xf32>
    %49 = vector.shape_cast %48 : vector<1x1x128xf32> to vector<1x128xf32>
    %50 = vector.broadcast %49 : vector<1x128xf32> to vector<64x128xf32>
    %51 = arith.addf %47, %50 : vector<64x128xf32>
    %52 = arith.negf %51 : vector<64x128xf32>
    %53 = math.exp %52 : vector<64x128xf32>
    %cst_30 = arith.constant 1.000000e+00 : f32
    %54 = vector.broadcast %cst_30 : f32 to vector<64x128xf32>
    %55 = arith.addf %54, %53 : vector<64x128xf32>
    %56 = arith.divf %54, %55 : vector<64x128xf32>
    %57 = arith.mulf %51, %56 : vector<64x128xf32>
    %58 = arith.addf %29, %57 : vector<64x128xf32>
    %c0_31 = arith.constant 0 : index
    %c0_32 = arith.constant 0 : index
    %59 = vector.load %arg2[%c0_31, %c0_32] : memref<64x128xf32, #tpu.memory_space<vmem>>, vector<64x128xf32>
    %60 = arith.addf %58, %59 : vector<64x128xf32>
    %c0_33 = arith.constant 0 : index
    %c0_34 = arith.constant 0 : index
    %61 = vector.load %arg7[%c0_33, %c0_34] : memref<64x128xf32, #tpu.memory_space<vmem>>, vector<64x128xf32>
    tpu.vector_store %arg7[%c0_33, %c0_34], %60 {strides = array<i32>} : memref<64x128xf32, #tpu.memory_space<vmem>>, vector<64x128xf32>,
    return
  }
  func.func @transform_0(%arg0: i32) -> (i32, i32) {
    %c0_i32 = arith.constant 0 : i32
    %c0_i32_0 = arith.constant 0 : i32
    return %arg0, %c0_i32 : i32, i32
  }
  func.func @transform_1(%arg0: i32) -> (i32, i32) {
    %c0_i32 = arith.constant 0 : i32
    %c0_i32_0 = arith.constant 0 : i32
    return %arg0, %c0_i32 : i32, i32
  }
  func.func @transform_2(%arg0: i32) -> (i32, i32, i32) {
    %c0_i32 = arith.constant 0 : i32
    %c0_i32_0 = arith.constant 0 : i32
    %c0_i32_1 = arith.constant 0 : i32
    %c0_i32_2 = arith.constant 0 : i32
    return %c0_i32, %c0_i32_0, %c0_i32_1 : i32, i32, i32
  }
  func.func @transform_3(%arg0: i32) -> (i32, i32, i32) {
    %c0_i32 = arith.constant 0 : i32
    %c0_i32_0 = arith.constant 0 : i32
    %c0_i32_1 = arith.constant 0 : i32
    %c0_i32_2 = arith.constant 0 : i32
    return %c0_i32, %c0_i32_0, %c0_i32_1 : i32, i32, i32
  }
  func.func @transform_4(%arg0: i32) -> (i32, i32, i32) {
    %c0_i32 = arith.constant 0 : i32
    %c0_i32_0 = arith.constant 0 : i32
    %c0_i32_1 = arith.constant 0 : i32
    %c0_i32_2 = arith.constant 0 : i32
    return %c0_i32, %c0_i32_0, %c0_i32_1 : i32, i32, i32
  }
  func.func @transform_5(%arg0: i32) -> (i32, i32, i32) {
    %c0_i32 = arith.constant 0 : i32
    %c0_i32_0 = arith.constant 0 : i32
    %c0_i32_1 = arith.constant 0 : i32
    %c0_i32_2 = arith.constant 0 : i32
    return %c0_i32, %c0_i32_0, %c0_i32_1 : i32, i32, i32
  }
  func.func @transform_6(%arg0: i32) -> (i32, i32) {
    %c0_i32 = arith.constant 0 : i32
    %c0_i32_0 = arith.constant 0 : i32
    return %arg0, %c0_i32 : i32, i32
  }
}

</mosaic_0001>

<llo_original>
// kernel: interaction_block_forward.3
$region0: #{interaction_block_forward.3}
  #allocation0 [shape = 'u32[]', space=smem, size = 0x4, offset = 0x4, fixed_abs, tag = 'smem constant byte address 0x4 - core index']
  #allocation1 [shape = 'u32[144,128]{1,0:T(1,128)}', space=vmem, size = 0x12000, scoped, tag = 'internal scratch']
  %s0 = inlined_call_operand.vmem [shape: f32[64,64], index: 0, kind: input, shape index: {}]
  %s1 = inlined_call_operand.vmem [shape: f32[64,64], index: 1, kind: input, shape index: {}]
  %s2 = inlined_call_operand.vmem [shape: bf16[128,128], index: 2, kind: input, shape index: {}]
  %s3 = inlined_call_operand.vmem [shape: f32[1,128], index: 3, kind: input, shape index: {}]
  %s4 = inlined_call_operand.vmem [shape: bf16[128,128], index: 4, kind: input, shape index: {}]
  %s5 = inlined_call_operand.vmem [shape: f32[1,128], index: 5, kind: input, shape index: {}]
  %s6 = inlined_call_operand.vmem [shape: bf16[64,128], index: 6, kind: output, shape index: {}]
  %s7 = sld [smem:[#allocation0]]
  $region34: #{interaction_block_forward.3} parent=0
    _
  %s9 = ssub.s32 1, %s7
  %s10 = scalar_select 0, %s9, %s7
  // Predicated region
  $region2: #{interaction_block_forward.3} parent=0 // pred_check
    _
  $region3: #{interaction_block_forward.3} parent=0 // pred_check_branch
    %12 = sbr.rel (0) target = $region5
  $region4: #{interaction_block_forward.3} parent=0 // pred_region
    _
  $region5: #{interaction_block_forward.3} parent=0 // pred_fallthru
    _
  // Predicated region
  $region6: #{interaction_block_forward.3} parent=0 // pred_check
    _
  $region7: #{interaction_block_forward.3} parent=0 // pred_check_branch
    %14 = sbr.rel (0) target = $region9
  $region8: #{interaction_block_forward.3} parent=0 // pred_region
    _
  $region9: #{interaction_block_forward.3} parent=0 // pred_fallthru
    _
  // Predicated region
  $region10: #{interaction_block_forward.3} parent=0 // pred_check
    _
  $region11: #{interaction_block_forward.3} parent=0 // pred_check_branch
    %16 = sbr.rel (0) target = $region13
  $region12: #{interaction_block_forward.3} parent=0 // pred_region
    _
  $region13: #{interaction_block_forward.3} parent=0 // pred_fallthru
    _
  // Predicated region
  $region14: #{interaction_block_forward.3} parent=0 // pred_check
    _
  $region15: #{interaction_block_forward.3} parent=0 // pred_check_branch
    %18 = sbr.rel (0) target = $region17
  $region16: #{interaction_block_forward.3} parent=0 // pred_region
    _
  $region17: #{interaction_block_forward.3} parent=0 // pred_fallthru
    _
  // Predicated region
  $region18: #{interaction_block_forward.3} parent=0 // pred_check
    _
  $region19: #{interaction_block_forward.3} parent=0 // pred_check_branch
    %20 = sbr.rel (0) target = $region21
  $region20: #{interaction_block_forward.3} parent=0 // pred_region
    _
  $region21: #{interaction_block_forward.3} parent=0 // pred_fallthru
    _
  // Predicated region
  $region22: #{interaction_block_forward.3} parent=0 // pred_check
    _
  $region23: #{interaction_block_forward.3} parent=0 // pred_check_branch
    %22 = sbr.rel (0) target = $region25
  $region24: #{interaction_block_forward.3} parent=0 // pred_region
    _
  $region25: #{interaction_block_forward.3} parent=0 // pred_fallthru
    _
  %v24 = vld [vmem:[%s0] sm:$0xff]
  %v25 = vld [vmem:[%s0 + $0x8] sm:$0xff]
  %v26 = vld [vmem:[%s0 + $0x10] sm:$0xff]
  %v27 = vld [vmem:[%s0 + $0x18] sm:$0xff]
  %v28 = vld [vmem:[%s0 + $0x20] sm:$0xff]
  %v29 = vld [vmem:[%s0 + $0x28] sm:$0xff]
  %v30 = vld [vmem:[%s0 + $0x30] sm:$0xff]
  %v31 = vld [vmem:[%s0 + $0x38] sm:$0xff]
  %v32 = vld [vmem:[%s1] sm:$0xff]
  %v33 = vld [vmem:[%s1 + $0x8] sm:$0xff]
  %v34 = vld [vmem:[%s1 + $0x10] sm:$0xff]
  %v35 = vld [vmem:[%s1 + $0x18] sm:$0xff]
  %v36 = vld [vmem:[%s1 + $0x20] sm:$0xff]
  %v37 = vld [vmem:[%s1 + $0x28] sm:$0xff]
  %v38 = vld [vmem:[%s1 + $0x30] sm:$0xff]
  %v39 = vld [vmem:[%s1 + $0x38] sm:$0xff]
  %48 = vrot.lane.b32.xlu0 %v32, 64
  %v49 = vpop.permute.xlu0 %48
  %50 = vrot.lane.b32.xlu0 %v33, 64
  %v51 = vpop.permute.xlu0 %50
  %52 = vrot.lane.b32.xlu0 %v34, 64
  %v53 = vpop.permute.xlu0 %52
  %54 = vrot.lane.b32.xlu0 %v35, 64
  %v55 = vpop.permute.xlu0 %54
  %56 = vrot.lane.b32.xlu0 %v36, 64
  %v57 = vpop.permute.xlu0 %56
  %58 = vrot.lane.b32.xlu0 %v37, 64
  %v59 = vpop.permute.xlu0 %58
  %60 = vrot.lane.b32.xlu0 %v38, 64
  %v61 = vpop.permute.xlu0 %60
  %62 = vrot.lane.b32.xlu0 %v39, 64
  %v63 = vpop.permute.xlu0 %62
  %vm72 = vcmask 523264
  %v73 = vsel %vm72, %v24, %v49
  %v74 = vsel %vm72, %v25, %v51
  %v75 = vsel %vm72, %v26, %v53
  %v76 = vsel %vm72, %v27, %v55
  %v77 = vsel %vm72, %v28, %v57
  %v78 = vsel %vm72, %v29, %v59
  %v79 = vsel %vm72, %v30, %v61
  %v80 = vsel %vm72, %v31, %v63
  %v81 = vpack.c.bf16 %v74, %v73
  %v82 = vpack.c.bf16 %v76, %v75
  %v83 = vpack.c.bf16 %v78, %v77
  %v84 = vpack.c.bf16 %v80, %v79
  %v85 = vld [vmem:[%s2] sm:$0xf]
  %v86 = vld [vmem:[%s2 + $0x4] sm:$0xf]
  %v87 = vld [vmem:[%s2 + $0x8] sm:$0xf]
  %v88 = vld [vmem:[%s2 + $0xc] sm:$0xf]
  %v89 = vld [vmem:[%s2 + $0x10] sm:$0xf]
  %v90 = vld [vmem:[%s2 + $0x14] sm:$0xf]
  %v91 = vld [vmem:[%s2 + $0x18] sm:$0xf]
  %v92 = vld [vmem:[%s2 + $0x1c] sm:$0xf]
  %v93 = vld [vmem:[%s2 + $0x20] sm:$0xf]
  %v94 = vld [vmem:[%s2 + $0x24] sm:$0xf]
  %v95 = vld [vmem:[%s2 + $0x28] sm:$0xf]
  %v96 = vld [vmem:[%s2 + $0x2c] sm:$0xf]
  %v97 = vld [vmem:[%s2 + $0x30] sm:$0xf]
  %v98 = vld [vmem:[%s2 + $0x34] sm:$0xf]
  %v99 = vld [vmem:[%s2 + $0x38] sm:$0xf]
  %v100 = vld [vmem:[%s2 + $0x3c] sm:$0xf]
  %v101 = vld [vmem:[%s3] sm:$0x1]
  %v103 = vlaneseq
  %v104 = vshrl.u32 %v103, 7
  %v105 = vsub.s32 0, %v104
  %v106 = vrot.slane %v101, %v105
  %v124 = vunpack.c.l.b16 %v85
  %v125 = vunpack.c.l.b16 %v86
  %v126 = vunpack.c.l.b16 %v87
  %v127 = vunpack.c.l.b16 %v88
  %v128 = vunpack.c.l.b16 %v89
  %v129 = vunpack.c.l.b16 %v90
  %v130 = vunpack.c.l.b16 %v91
  %v131 = vunpack.c.l.b16 %v92
  %v132 = vunpack.c.l.b16 %v93
  %v133 = vunpack.c.l.b16 %v94
  %v134 = vunpack.c.l.b16 %v95
  %v135 = vunpack.c.l.b16 %v96
  %v136 = vunpack.c.l.b16 %v97
  %v137 = vunpack.c.l.b16 %v98
  %v138 = vunpack.c.l.b16 %v99
  %v139 = vunpack.c.l.b16 %v100
  %v140 = vpack.c.b16 %v125, %v124
  %v141 = vpack.c.b16 %v127, %v126
  %v142 = vpack.c.b16 %v129, %v128
  %v143 = vpack.c.b16 %v131, %v130
  %v144 = vpack.c.b16 %v133, %v132
  %v145 = vpack.c.b16 %v135, %v134
  %v146 = vpack.c.b16 %v137, %v136
  %v147 = vpack.c.b16 %v139, %v138
  %156 = vmatprep.subr.bf16.mxu0 0
  %157 = vmatpush1.bf16.msra.mxu0 %v140
  %158 = vmatprep.subr.bf16.mxu0 0
  %159 = vmatpush1.bf16.msra.mxu0 %v141
  %160 = vmatprep.subr.bf16.mxu0 0
  %161 = vmatpush1.bf16.msra.mxu0 %v142
  %162 = vmatprep.subr.bf16.mxu0 0
  %163 = vmatpush1.bf16.msra.mxu0 %v143
  %164 = vmatprep.subr.bf16.mxu0 0
  %165 = vmatpush1.bf16.msra.mxu0 %v144
  %166 = vmatprep.subr.bf16.mxu0 0
  %167 = vmatpush1.bf16.msra.mxu0 %v145
  %168 = vmatprep.subr.bf16.mxu0 0
  %169 = vmatpush1.bf16.msra.mxu0 %v146
  %170 = vmatprep.subr.bf16.mxu0 0
  %171 = vmatpush1.bf16.msra.mxu0 %v147
  %172 = vmatprep.subr.bf16.mxu0 0
  %173 = vmatpush1.bf16.msra.mxu0 0
  %174 = vmatprep.subr.bf16.mxu0 0
  %175 = vmatpush1.bf16.msra.mxu0 0
  %176 = vmatprep.subr.bf16.mxu0 0
  %177 = vmatpush1.bf16.msra.mxu0 0
  %178 = vmatprep.subr.bf16.mxu0 0
  %179 = vmatpush1.bf16.msra.mxu0 0
  %180 = vmatprep.subr.bf16.mxu0 0
  %181 = vmatpush1.bf16.msra.mxu0 0
  %182 = vmatprep.subr.bf16.mxu0 0
  %183 = vmatpush1.bf16.msra.mxu0 0
  %184 = vmatprep.subr.bf16.mxu0 0
  %185 = vmatpush1.bf16.msra.mxu0 0
  %186 = vmatprep.subr.bf16.mxu0 0
  %187 = vmatpush1.bf16.msra.mxu0 0
  %188 = vmatprep.mubr.bf16.mxu0 0
  %189 = vmatmul.mubr.bf16.gmra.mrb[0].mxu0 %v81
  %v190 = vpop.f32.mrb[0].mxu0
  %v191 = vadd.f32 %v106, %v190
  %v192 = vpop.f32.mrb[0].mxu0
  %v193 = vpop.f32.mrb[0].mxu0
  %v194 = vadd.f32 %v106, %v193
  %v195 = vpop.f32.mrb[0].mxu0
  %196 = vmatprep.mubr.bf16.mxu0 0
  %197 = vmatmul.mubr.bf16.gmra.mrb[0].mxu0 %v82
  %v198 = vpop.f32.mrb[0].mxu0
  %v199 = vadd.f32 %v106, %v198
  %v200 = vpop.f32.mrb[0].mxu0
  %v201 = vpop.f32.mrb[0].mxu0
  %v202 = vadd.f32 %v106, %v201
  %v203 = vpop.f32.mrb[0].mxu0
  %204 = vmatprep.mubr.bf16.mxu0 0
  %205 = vmatmul.mubr.bf16.gmra.mrb[0].mxu0 %v83
  %v206 = vpop.f32.mrb[0].mxu0
  %v207 = vadd.f32 %v106, %v206
  %v208 = vpop.f32.mrb[0].mxu0
  %v209 = vpop.f32.mrb[0].mxu0
  %v210 = vadd.f32 %v106, %v209
  %v211 = vpop.f32.mrb[0].mxu0
  %212 = vmatprep.mubr.bf16.mxu0 0
  %213 = vmatmul.mubr.bf16.gmra.mrb[0].mxu0 %v84
  %v214 = vpop.f32.mrb[0].mxu0
  %v215 = vadd.f32 %v106, %v214
  %v216 = vpop.f32.mrb[0].mxu0
  %v217 = vpop.f32.mrb[0].mxu0
  %v218 = vadd.f32 %v106, %v217
  %v219 = vpop.f32.mrb[0].mxu0
  %220 = vdwg.mxu0
  %v221 = vxor.u32 %v191, 2147483648
  %v222 = vxor.u32 %v194, 2147483648
  %v223 = vxor.u32 %v199, 2147483648
  %v224 = vxor.u32 %v202, 2147483648
  %v225 = vxor.u32 %v207, 2147483648
  %v226 = vxor.u32 %v210, 2147483648
  %v227 = vxor.u32 %v215, 2147483648
  %v228 = vxor.u32 %v218, 2147483648
  %v229 = vmul.f32 %v221, 1.442695
  %v230 = vpow.pop %v229
  %v231 = vmul.f32 %v222, 1.442695
  %v232 = vpow.pop %v231
  %v233 = vmul.f32 %v223, 1.442695
  %v234 = vpow.pop %v233
  %v235 = vmul.f32 %v224, 1.442695
  %v236 = vpow.pop %v235
  %v237 = vmul.f32 %v225, 1.442695
  %v238 = vpow.pop %v237
  %v239 = vmul.f32 %v226, 1.442695
  %v240 = vpow.pop %v239
  %v241 = vmul.f32 %v227, 1.442695
  %v242 = vpow.pop %v241
  %v243 = vmul.f32 %v228, 1.442695
  %v244 = vpow.pop %v243
  %v245 = vadd.f32 %v230, 1.0
  %v246 = vadd.f32 %v232, 1.0
  %v247 = vadd.f32 %v234, 1.0
  %v248 = vadd.f32 %v236, 1.0
  %v249 = vadd.f32 %v238, 1.0
  %v250 = vadd.f32 %v240, 1.0
  %v251 = vadd.f32 %v242, 1.0
  %v252 = vadd.f32 %v244, 1.0
  %v253 = vrcp.pop %v245
  %v254 = vmul.f32 1.0, %v253
  %v255 = vrcp.pop %v246
  %v256 = vmul.f32 1.0, %v255
  %v257 = vrcp.pop %v247
  %v258 = vmul.f32 1.0, %v257
  %v259 = vrcp.pop %v248
  %v260 = vmul.f32 1.0, %v259
  %v261 = vrcp.pop %v249
  %v262 = vmul.f32 1.0, %v261
  %v263 = vrcp.pop %v250
  %v264 = vmul.f32 1.0, %v263
  %v265 = vrcp.pop %v251
  %v266 = vmul.f32 1.0, %v265
  %v267 = vrcp.pop %v252
  %v268 = vmul.f32 1.0, %v267
  %v269 = vmul.f32 %v191, %v254
  %v270 = vmul.f32 %v194, %v256
  %v271 = vmul.f32 %v199, %v258
  %v272 = vmul.f32 %v202, %v260
  %v273 = vmul.f32 %v207, %v262
  %v274 = vmul.f32 %v210, %v264
  %v275 = vmul.f32 %v215, %v266
  %v276 = vmul.f32 %v218, %v268
  %277 = vrot.lane.b32.xlu0 %v269, 64
  %v278 = vpop.permute.xlu0 %277
  %279 = vrot.lane.b32.xlu0 %v270, 64
  %v280 = vpop.permute.xlu0 %279
  %281 = vrot.lane.b32.xlu0 %v271, 64
  %v282 = vpop.permute.xlu0 %281
  %283 = vrot.lane.b32.xlu0 %v272, 64
  %v284 = vpop.permute.xlu0 %283
  %285 = vrot.lane.b32.xlu0 %v273, 64
  %v286 = vpop.permute.xlu0 %285
  %287 = vrot.lane.b32.xlu0 %v274, 64
  %v288 = vpop.permute.xlu0 %287
  %289 = vrot.lane.b32.xlu0 %v275, 64
  %v290 = vpop.permute.xlu0 %289
  %291 = vrot.lane.b32.xlu0 %v276, 64
  %v292 = vpop.permute.xlu0 %291
  %v293 = vmul.f32 %v269, %v278
  %v294 = vmul.f32 %v270, %v280
  %v295 = vmul.f32 %v271, %v282
  %v296 = vmul.f32 %v272, %v284
  %v297 = vmul.f32 %v273, %v286
  %v298 = vmul.f32 %v274, %v288
  %v299 = vmul.f32 %v275, %v290
  %v300 = vmul.f32 %v276, %v292
  %v301 = vpack.c.bf16 %v294, %v293
  %v302 = vpack.c.bf16 %v296, %v295
  %v303 = vpack.c.bf16 %v298, %v297
  %v304 = vpack.c.bf16 %v300, %v299
  %v305 = vld [vmem:[%s4] sm:$0xf]
  %v306 = vld [vmem:[%s4 + $0x4] sm:$0xf]
  %v307 = vld [vmem:[%s4 + $0x8] sm:$0xf]
  %v308 = vld [vmem:[%s4 + $0xc] sm:$0xf]
  %v309 = vld [vmem:[%s4 + $0x10] sm:$0xf]
  %v310 = vld [vmem:[%s4 + $0x14] sm:$0xf]
  %v311 = vld [vmem:[%s4 + $0x18] sm:$0xf]
  %v312 = vld [vmem:[%s4 + $0x1c] sm:$0xf]
  %v313 = vld [vmem:[%s4 + $0x20] sm:$0xf]
  %v314 = vld [vmem:[%s4 + $0x24] sm:$0xf]
  %v315 = vld [vmem:[%s4 + $0x28] sm:$0xf]
  %v316 = vld [vmem:[%s4 + $0x2c] sm:$0xf]
  %v317 = vld [vmem:[%s4 + $0x30] sm:$0xf]
  %v318 = vld [vmem:[%s4 + $0x34] sm:$0xf]
  %v319 = vld [vmem:[%s4 + $0x38] sm:$0xf]
  %v320 = vld [vmem:[%s4 + $0x3c] sm:$0xf]
  %v321 = vld [vmem:[%s5] sm:$0x1]
  %v323 = vlaneseq
  %v324 = vshrl.u32 %v323, 7
  %v325 = vsub.s32 0, %v324
  %v326 = vrot.slane %v321, %v325
  %v344 = vunpack.c.l.b16 %v305
  %v345 = vunpack.c.l.b16 %v306
  %v346 = vunpack.c.l.b16 %v307
  %v347 = vunpack.c.l.b16 %v308
  %v348 = vunpack.c.l.b16 %v309
  %v349 = vunpack.c.l.b16 %v310
  %v350 = vunpack.c.l.b16 %v311
  %v351 = vunpack.c.l.b16 %v312
  %v352 = vunpack.c.l.b16 %v313
  %v353 = vunpack.c.l.b16 %v314
  %v354 = vunpack.c.l.b16 %v315
  %v355 = vunpack.c.l.b16 %v316
  %v356 = vunpack.c.l.b16 %v317
  %v357 = vunpack.c.l.b16 %v318
  %v358 = vunpack.c.l.b16 %v319
  %v359 = vunpack.c.l.b16 %v320
  %v360 = vpack.c.b16 %v345, %v344
  %v361 = vpack.c.b16 %v347, %v346
  %v362 = vpack.c.b16 %v349, %v348
  %v363 = vpack.c.b16 %v351, %v350
  %v364 = vpack.c.b16 %v353, %v352
  %v365 = vpack.c.b16 %v355, %v354
  %v366 = vpack.c.b16 %v357, %v356
  %v367 = vpack.c.b16 %v359, %v358
  %376 = vmatprep.subr.bf16.mxu0 0
  %377 = vmatpush1.bf16.msra.mxu0 %v360
  %378 = vmatprep.subr.bf16.mxu0 0
  %379 = vmatpush1.bf16.msra.mxu0 %v361
  %380 = vmatprep.subr.bf16.mxu0 0
  %381 = vmatpush1.bf16.msra.mxu0 %v362
  %382 = vmatprep.subr.bf16.mxu0 0
  %383 = vmatpush1.bf16.msra.mxu0 %v363
  %384 = vmatprep.subr.bf16.mxu0 0
  %385 = vmatpush1.bf16.msra.mxu0 %v364
  %386 = vmatprep.subr.bf16.mxu0 0
  %387 = vmatpush1.bf16.msra.mxu0 %v365
  %388 = vmatprep.subr.bf16.mxu0 0
  %389 = vmatpush1.bf16.msra.mxu0 %v366
  %390 = vmatprep.subr.bf16.mxu0 0
  %391 = vmatpush1.bf16.msra.mxu0 %v367
  %392 = vmatprep.subr.bf16.mxu0 0
  %393 = vmatpush1.bf16.msra.mxu0 0
  %394 = vmatprep.subr.bf16.mxu0 0
  %395 = vmatpush1.bf16.msra.mxu0 0
  %396 = vmatprep.subr.bf16.mxu0 0
  %397 = vmatpush1.bf16.msra.mxu0 0
  %398 = vmatprep.subr.bf16.mxu0 0
  %399 = vmatpush1.bf16.msra.mxu0 0
  %400 = vmatprep.subr.bf16.mxu0 0
  %401 = vmatpush1.bf16.msra.mxu0 0
  %402 = vmatprep.subr.bf16.mxu0 0
  %403 = vmatpush1.bf16.msra.mxu0 0
  %404 = vmatprep.subr.bf16.mxu0 0
  %405 = vmatpush1.bf16.msra.mxu0 0
  %406 = vmatprep.subr.bf16.mxu0 0
  %407 = vmatpush1.bf16.msra.mxu0 0
  %408 = vmatprep.mubr.bf16.mxu0 0
  %409 = vmatmul.mubr.bf16.gmra.mrb[0].mxu0 %v301
  %v410 = vpop.f32.mrb[0].mxu0
  %v411 = vadd.f32 %v326, %v410
  %v412 = vpop.f32.mrb[0].mxu0
  %v413 = vpop.f32.mrb[0].mxu0
  %v414 = vadd.f32 %v326, %v413
  %v415 = vpop.f32.mrb[0].mxu0
  %416 = vmatprep.mubr.bf16.mxu0 0
  %417 = vmatmul.mubr.bf16.gmra.mrb[0].mxu0 %v302
  %v418 = vpop.f32.mrb[0].mxu0
  %v419 = vadd.f32 %v326, %v418
  %v420 = vpop.f32.mrb[0].mxu0
  %v421 = vpop.f32.mrb[0].mxu0
  %v422 = vadd.f32 %v326, %v421
  %v423 = vpop.f32.mrb[0].mxu0
  %424 = vmatprep.mubr.bf16.mxu0 0
  %425 = vmatmul.mubr.bf16.gmra.mrb[0].mxu0 %v303
  %v426 = vpop.f32.mrb[0].mxu0
  %v427 = vadd.f32 %v326, %v426
  %v428 = vpop.f32.mrb[0].mxu0
  %v429 = vpop.f32.mrb[0].mxu0
  %v430 = vadd.f32 %v326, %v429
  %v431 = vpop.f32.mrb[0].mxu0
  %432 = vmatprep.mubr.bf16.mxu0 0
  %433 = vmatmul.mubr.bf16.gmra.mrb[0].mxu0 %v304
  %v434 = vpop.f32.mrb[0].mxu0
  %v435 = vadd.f32 %v326, %v434
  %v436 = vpop.f32.mrb[0].mxu0
  %v437 = vpop.f32.mrb[0].mxu0
  %v438 = vadd.f32 %v326, %v437
  %v439 = vpop.f32.mrb[0].mxu0
  %440 = vdwg.mxu0
  %v441 = vxor.u32 %v411, 2147483648
  %v442 = vxor.u32 %v414, 2147483648
  %v443 = vxor.u32 %v419, 2147483648
  %v444 = vxor.u32 %v422, 2147483648
  %v445 = vxor.u32 %v427, 2147483648
  %v446 = vxor.u32 %v430, 2147483648
  %v447 = vxor.u32 %v435, 2147483648
  %v448 = vxor.u32 %v438, 2147483648
  %v449 = vmul.f32 %v441, 1.442695
  %v450 = vpow.pop %v449
  %v451 = vmul.f32 %v442, 1.442695
  %v452 = vpow.pop %v451
  %v453 = vmul.f32 %v443, 1.442695
  %v454 = vpow.pop %v453
  %v455 = vmul.f32 %v444, 1.442695
  %v456 = vpow.pop %v455
  %v457 = vmul.f32 %v445, 1.442695
  %v458 = vpow.pop %v457
  %v459 = vmul.f32 %v446, 1.442695
  %v460 = vpow.pop %v459
  %v461 = vmul.f32 %v447, 1.442695
  %v462 = vpow.pop %v461
  %v463 = vmul.f32 %v448, 1.442695
  %v464 = vpow.pop %v463
  %v465 = vadd.f32 %v450, 1.0
  %v466 = vadd.f32 %v452, 1.0
  %v467 = vadd.f32 %v454, 1.0
  %v468 = vadd.f32 %v456, 1.0
  %v469 = vadd.f32 %v458, 1.0
  %v470 = vadd.f32 %v460, 1.0
  %v471 = vadd.f32 %v462, 1.0
  %v472 = vadd.f32 %v464, 1.0
  %v473 = vrcp.pop %v465
  %v474 = vmul.f32 1.0, %v473
  %v475 = vrcp.pop %v466
  %v476 = vmul.f32 1.0, %v475
  %v477 = vrcp.pop %v467
  %v478 = vmul.f32 1.0, %v477
  %v479 = vrcp.pop %v468
  %v480 = vmul.f32 1.0, %v479
  %v481 = vrcp.pop %v469
  %v482 = vmul.f32 1.0, %v481
  %v483 = vrcp.pop %v470
  %v484 = vmul.f32 1.0, %v483
  %v485 = vrcp.pop %v471
  %v486 = vmul.f32 1.0, %v485
  %v487 = vrcp.pop %v472
  %v488 = vmul.f32 1.0, %v487
  %v489 = vmul.f32 %v411, %v474
  %v490 = vmul.f32 %v414, %v476
  %v491 = vmul.f32 %v419, %v478
  %v492 = vmul.f32 %v422, %v480
  %v493 = vmul.f32 %v427, %v482
  %v494 = vmul.f32 %v430, %v484
  %v495 = vmul.f32 %v435, %v486
  %v496 = vmul.f32 %v438, %v488
  %v497 = vpack.c.bf16 %v490, %v489
  %v498 = vpack.c.bf16 %v492, %v491
  %v499 = vpack.c.bf16 %v494, %v493
  %v500 = vpack.c.bf16 %v496, %v495
  %v505 = vunpack.c.l.b16 %v497
  %v506 = vunpack.c.h.b16 %v497
  %v507 = vunpack.c.l.b16 %v498
  %v508 = vunpack.c.h.b16 %v498
  %v509 = vunpack.c.l.b16 %v499
  %v510 = vunpack.c.h.b16 %v499
  %v511 = vunpack.c.l.b16 %v500
  %v512 = vunpack.c.h.b16 %v500
  %v513 = vpack.c.b16 %v505, %v505
  %v514 = vpack.c.b16 %v506, %v506
  %v515 = vpack.c.b16 %v507, %v507
  %v516 = vpack.c.b16 %v508, %v508
  %v517 = vpack.c.b16 %v509, %v509
  %v518 = vpack.c.b16 %v510, %v510
  %v519 = vpack.c.b16 %v511, %v511
  %v520 = vpack.c.b16 %v512, %v512
  %529 = vst [vmem:[%s6] sm:$0xf] %v513
  %530 = vst [vmem:[%s6 + $0x4] sm:$0xf] %v514
  %531 = vst [vmem:[%s6 + $0x8] sm:$0xf] %v515
  %532 = vst [vmem:[%s6 + $0xc] sm:$0xf] %v516
  %533 = vst [vmem:[%s6 + $0x10] sm:$0xf] %v517
  %534 = vst [vmem:[%s6 + $0x14] sm:$0xf] %v518
  %535 = vst [vmem:[%s6 + $0x18] sm:$0xf] %v519
  %536 = vst [vmem:[%s6 + $0x1c] sm:$0xf] %v520
  // Predicated region
  $region26: #{interaction_block_forward.3} parent=0 // pred_check
    _
  $region27: #{interaction_block_forward.3} parent=0 // pred_check_branch
    %538 = sbr.rel (0) target = $region29
  $region28: #{interaction_block_forward.3} parent=0 // pred_region
    _
  $region29: #{interaction_block_forward.3} parent=0 // pred_fallthru
    _
  // Predicated region
  $region30: #{interaction_block_forward.3} parent=0 // pred_check
    _
  $region31: #{interaction_block_forward.3} parent=0 // pred_check_branch
    %540 = sbr.rel (0) target = $region33
  $region32: #{interaction_block_forward.3} parent=0 // pred_region
    _
  $region33: #{interaction_block_forward.3} parent=0 // pred_fallthru
    _

// kernel: interaction_block_forward.4
$region0: #{interaction_block_forward.4}
  #allocation0 [shape = 'u32[]', space=smem, size = 0x4, offset = 0x4, fixed_abs, tag = 'smem constant byte address 0x4 - core index']
  #allocation1 [shape = 'u32[144,128]{1,0:T(1,128)}', space=vmem, size = 0x12000, scoped, tag = 'internal scratch']
  %s0 = inlined_call_operand.vmem [shape: bf16[128,128], index: 0, kind: input, shape index: {}]
  %s1 = inlined_call_operand.vmem [shape: f32[128,32], index: 1, kind: input, shape index: {}]
  %s2 = inlined_call_operand.vmem [shape: bf16[32,128], index: 2, kind: input, shape index: {}]
  %s3 = inlined_call_operand.vmem [shape: bf16[128,128], index: 3, kind: input, shape index: {}]
  %s4 = inlined_call_operand.vmem [shape: bf16[128,128], index: 4, kind: input, shape index: {}]
  %s5 = inlined_call_operand.vmem [shape: f32[1,128], index: 5, kind: input, shape index: {}]
  %s6 = inlined_call_operand.vmem [shape: f32[128,128], index: 6, kind: output, shape index: {}]
  %s7 = sld [smem:[#allocation0]]
  $region34: #{interaction_block_forward.4} parent=0
    _
  %s9 = ssub.s32 1, %s7
  %s10 = scalar_select 0, %s9, %s7
  // Predicated region
  $region2: #{interaction_block_forward.4} parent=0 // pred_check
    _
  $region3: #{interaction_block_forward.4} parent=0 // pred_check_branch
    %12 = sbr.rel (0) target = $region5
  $region4: #{interaction_block_forward.4} parent=0 // pred_region
    _
  $region5: #{interaction_block_forward.4} parent=0 // pred_fallthru
    _
  // Predicated region
  $region6: #{interaction_block_forward.4} parent=0 // pred_check
    _
  $region7: #{interaction_block_forward.4} parent=0 // pred_check_branch
    %14 = sbr.rel (0) target = $region9
  $region8: #{interaction_block_forward.4} parent=0 // pred_region
    _
  $region9: #{interaction_block_forward.4} parent=0 // pred_fallthru
    _
  // Predicated region
  $region10: #{interaction_block_forward.4} parent=0 // pred_check
    _
  $region11: #{interaction_block_forward.4} parent=0 // pred_check_branch
    %16 = sbr.rel (0) target = $region13
  $region12: #{interaction_block_forward.4} parent=0 // pred_region
    _
  $region13: #{interaction_block_forward.4} parent=0 // pred_fallthru
    _
  // Predicated region
  $region14: #{interaction_block_forward.4} parent=0 // pred_check
    _
  $region15: #{interaction_block_forward.4} parent=0 // pred_check_branch
    %18 = sbr.rel (0) target = $region17
  $region16: #{interaction_block_forward.4} parent=0 // pred_region
    _
  $region17: #{interaction_block_forward.4} parent=0 // pred_fallthru
    _
  // Predicated region
  $region18: #{interaction_block_forward.4} parent=0 // pred_check
    _
  $region19: #{interaction_block_forward.4} parent=0 // pred_check_branch
    %20 = sbr.rel (0) target = $region21
  $region20: #{interaction_block_forward.4} parent=0 // pred_region
    _
  $region21: #{interaction_block_forward.4} parent=0 // pred_fallthru
    _
  // Predicated region
  $region22: #{interaction_block_forward.4} parent=0 // pred_check
    _
  $region23: #{interaction_block_forward.4} parent=0 // pred_check_branch
    %22 = sbr.rel (0) target = $region25
  $region24: #{interaction_block_forward.4} parent=0 // pred_region
    _
  $region25: #{interaction_block_forward.4} parent=0 // pred_fallthru
    _
  %v24 = vld [vmem:[%s1] sm:$0xff]
  %v25 = vld [vmem:[%s1 + $0x8] sm:$0xff]
  %v26 = vld [vmem:[%s1 + $0x10] sm:$0xff]
  %v27 = vld [vmem:[%s1 + $0x18] sm:$0xff]
  %v28 = vld [vmem:[%s1 + $0x20] sm:$0xff]
  %v29 = vld [vmem:[%s1 + $0x28] sm:$0xff]
  %v30 = vld [vmem:[%s1 + $0x30] sm:$0xff]
  %v31 = vld [vmem:[%s1 + $0x38] sm:$0xff]
  %v32 = vld [vmem:[%s1 + $0x40] sm:$0xff]
  %v33 = vld [vmem:[%s1 + $0x48] sm:$0xff]
  %v34 = vld [vmem:[%s1 + $0x50] sm:$0xff]
  %v35 = vld [vmem:[%s1 + $0x58] sm:$0xff]
  %v36 = vld [vmem:[%s1 + $0x60] sm:$0xff]
  %v37 = vld [vmem:[%s1 + $0x68] sm:$0xff]
  %v38 = vld [vmem:[%s1 + $0x70] sm:$0xff]
  %v39 = vld [vmem:[%s1 + $0x78] sm:$0xff]
  %v40 = vpack.c.bf16 %v25, %v24
  %v41 = vpack.c.bf16 %v27, %v26
  %v42 = vpack.c.bf16 %v29, %v28
  %v43 = vpack.c.bf16 %v31, %v30
  %v44 = vpack.c.bf16 %v33, %v32
  %v45 = vpack.c.bf16 %v35, %v34
  %v46 = vpack.c.bf16 %v37, %v36
  %v47 = vpack.c.bf16 %v39, %v38
  %v48 = vld [vmem:[%s2] sm:$0xf]
  %v49 = vld [vmem:[%s2 + $0x4] sm:$0xf]
  %v50 = vld [vmem:[%s2 + $0x8] sm:$0xf]
  %v51 = vld [vmem:[%s2 + $0xc] sm:$0xf]
  %v56 = vunpack.c.l.b16 %v48
  %v57 = vunpack.c.l.b16 %v49
  %v58 = vunpack.c.l.b16 %v50
  %v59 = vunpack.c.l.b16 %v51
  %v60 = vpack.c.b16 %v57, %v56
  %v61 = vpack.c.b16 %v59, %v58
  %vm64 = vcmask 261120
  %v66 = vsel %vm64, %v40, 0
  %v69 = vsel %vm64, %v41, 0
  %v72 = vsel %vm64, %v42, 0
  %v75 = vsel %vm64, %v43, 0
  %v78 = vsel %vm64, %v44, 0
  %v81 = vsel %vm64, %v45, 0
  %v84 = vsel %vm64, %v46, 0
  %v87 = vsel %vm64, %v47, 0
  %89 = vmatprep.subr.bf16.mxu0 0
  %90 = vmatpush1.bf16.msra.mxu0 %v60
  %91 = vmatprep.subr.bf16.mxu0 0
  %92 = vmatpush1.bf16.msra.mxu0 %v61
  %93 = vmatprep.subr.bf16.mxu0 0
  %94 = vmatpush1.bf16.msra.mxu0 0
  %95 = vmatprep.subr.bf16.mxu0 0
  %96 = vmatpush1.bf16.msra.mxu0 0
  %97 = vmatprep.subr.bf16.mxu0 0
  %98 = vmatpush1.bf16.msra.mxu0 0
  %99 = vmatprep.subr.bf16.mxu0 0
  %100 = vmatpush1.bf16.msra.mxu0 0
  %101 = vmatprep.subr.bf16.mxu0 0
  %102 = vmatpush1.bf16.msra.mxu0 0
  %103 = vmatprep.subr.bf16.mxu0 0
  %104 = vmatpush1.bf16.msra.mxu0 0
  %105 = vmatprep.subr.bf16.mxu0 0
  %106 = vmatpush1.bf16.msra.mxu0 0
  %107 = vmatprep.subr.bf16.mxu0 0
  %108 = vmatpush1.bf16.msra.mxu0 0
  %109 = vmatprep.subr.bf16.mxu0 0
  %110 = vmatpush1.bf16.msra.mxu0 0
  %111 = vmatprep.subr.bf16.mxu0 0
  %112 = vmatpush1.bf16.msra.mxu0 0
  %113 = vmatprep.subr.bf16.mxu0 0
  %114 = vmatpush1.bf16.msra.mxu0 0
  %115 = vmatprep.subr.bf16.mxu0 0
  %116 = vmatpush1.bf16.msra.mxu0 0
  %117 = vmatprep.subr.bf16.mxu0 0
  %118 = vmatpush1.bf16.msra.mxu0 0
  %119 = vmatprep.subr.bf16.mxu0 0
  %120 = vmatpush1.bf16.msra.mxu0 0
  %121 = vmatprep.mubr.bf16.mxu0 0
  %122 = vmatmul.mubr.bf16.gmra.mrb[0].mxu0 %v66
  %v123 = vpop.f32.mrb[0].mxu0
  %v124 = vadd.f32 0.0, %v123
  %v125 = vpop.f32.mrb[0].mxu0
  %v126 = vpop.f32.mrb[0].mxu0
  %v127 = vadd.f32 0.0, %v126
  %v128 = vpop.f32.mrb[0].mxu0
  %129 = vmatprep.mubr.bf16.mxu0 0
  %130 = vmatmul.mubr.bf16.gmra.mrb[0].mxu0 %v69
  %v131 = vpop.f32.mrb[0].mxu0
  %v132 = vadd.f32 0.0, %v131
  %v133 = vpop.f32.mrb[0].mxu0
  %v134 = vpop.f32.mrb[0].mxu0
  %v135 = vadd.f32 0.0, %v134
  %v136 = vpop.f32.mrb[0].mxu0
  %137 = vmatprep.mubr.bf16.mxu0 0
  %138 = vmatmul.mubr.bf16.gmra.mrb[0].mxu0 %v72
  %v139 = vpop.f32.mrb[0].mxu0
  %v140 = vadd.f32 0.0, %v139
  %v141 = vpop.f32.mrb[0].mxu0
  %v142 = vpop.f32.mrb[0].mxu0
  %v143 = vadd.f32 0.0, %v142
  %v144 = vpop.f32.mrb[0].mxu0
  %145 = vmatprep.mubr.bf16.mxu0 0
  %146 = vmatmul.mubr.bf16.gmra.mrb[0].mxu0 %v75
  %v147 = vpop.f32.mrb[0].mxu0
  %v148 = vadd.f32 0.0, %v147
  %v149 = vpop.f32.mrb[0].mxu0
  %v150 = vpop.f32.mrb[0].mxu0
  %v151 = vadd.f32 0.0, %v150
  %v152 = vpop.f32.mrb[0].mxu0
  %153 = vmatprep.mubr.bf16.mxu0 0
  %154 = vmatmul.mubr.bf16.gmra.mrb[0].mxu0 %v78
  %v155 = vpop.f32.mrb[0].mxu0
  %v156 = vadd.f32 0.0, %v155
  %v157 = vpop.f32.mrb[0].mxu0
  %v158 = vpop.f32.mrb[0].mxu0
  %v159 = vadd.f32 0.0, %v158
  %v160 = vpop.f32.mrb[0].mxu0
  %161 = vmatprep.mubr.bf16.mxu0 0
  %162 = vmatmul.mubr.bf16.gmra.mrb[0].mxu0 %v81
  %v163 = vpop.f32.mrb[0].mxu0
  %v164 = vadd.f32 0.0, %v163
  %v165 = vpop.f32.mrb[0].mxu0
  %v166 = vpop.f32.mrb[0].mxu0
  %v167 = vadd.f32 0.0, %v166
  %v168 = vpop.f32.mrb[0].mxu0
  %169 = vmatprep.mubr.bf16.mxu0 0
  %170 = vmatmul.mubr.bf16.gmra.mrb[0].mxu0 %v84
  %v171 = vpop.f32.mrb[0].mxu0
  %v172 = vadd.f32 0.0, %v171
  %v173 = vpop.f32.mrb[0].mxu0
  %v174 = vpop.f32.mrb[0].mxu0
  %v175 = vadd.f32 0.0, %v174
  %v176 = vpop.f32.mrb[0].mxu0
  %177 = vmatprep.mubr.bf16.mxu0 0
  %178 = vmatmul.mubr.bf16.gmra.mrb[0].mxu0 %v87
  %v179 = vpop.f32.mrb[0].mxu0
  %v180 = vadd.f32 0.0, %v179
  %v181 = vpop.f32.mrb[0].mxu0
  %v182 = vpop.f32.mrb[0].mxu0
  %v183 = vadd.f32 0.0, %v182
  %v184 = vpop.f32.mrb[0].mxu0
  %185 = vdwg.mxu0
  %v186 = vxor.u32 %v124, 2147483648
  %v187 = vxor.u32 %v127, 2147483648
  %v188 = vxor.u32 %v132, 2147483648
  %v189 = vxor.u32 %v135, 2147483648
  %v190 = vxor.u32 %v140, 2147483648
  %v191 = vxor.u32 %v143, 2147483648
  %v192 = vxor.u32 %v148, 2147483648
  %v193 = vxor.u32 %v151, 2147483648
  %v194 = vxor.u32 %v156, 2147483648
  %v195 = vxor.u32 %v159, 2147483648
  %v196 = vxor.u32 %v164, 2147483648
  %v197 = vxor.u32 %v167, 2147483648
  %v198 = vxor.u32 %v172, 2147483648
  %v199 = vxor.u32 %v175, 2147483648
  %v200 = vxor.u32 %v180, 2147483648
  %v201 = vxor.u32 %v183, 2147483648
  %v202 = vmul.f32 %v186, 1.442695
  %v203 = vpow.pop %v202
  %v204 = vmul.f32 %v187, 1.442695
  %v205 = vpow.pop %v204
  %v206 = vmul.f32 %v188, 1.442695
  %v207 = vpow.pop %v206
  %v208 = vmul.f32 %v189, 1.442695
  %v209 = vpow.pop %v208
  %v210 = vmul.f32 %v190, 1.442695
  %v211 = vpow.pop %v210
  %v212 = vmul.f32 %v191, 1.442695
  %v213 = vpow.pop %v212
  %v214 = vmul.f32 %v192, 1.442695
  %v215 = vpow.pop %v214
  %v216 = vmul.f32 %v193, 1.442695
  %v217 = vpow.pop %v216
  %v218 = vmul.f32 %v194, 1.442695
  %v219 = vpow.pop %v218
  %v220 = vmul.f32 %v195, 1.442695
  %v221 = vpow.pop %v220
  %v222 = vmul.f32 %v196, 1.442695
  %v223 = vpow.pop %v222
  %v224 = vmul.f32 %v197, 1.442695
  %v225 = vpow.pop %v224
  %v226 = vmul.f32 %v198, 1.442695
  %v227 = vpow.pop %v226
  %v228 = vmul.f32 %v199, 1.442695
  %v229 = vpow.pop %v228
  %v230 = vmul.f32 %v200, 1.442695
  %v231 = vpow.pop %v230
  %v232 = vmul.f32 %v201, 1.442695
  %v233 = vpow.pop %v232
  %v234 = vadd.f32 %v203, 1.0
  %v235 = vadd.f32 %v205, 1.0
  %v236 = vadd.f32 %v207, 1.0
  %v237 = vadd.f32 %v209, 1.0
  %v238 = vadd.f32 %v211, 1.0
  %v239 = vadd.f32 %v213, 1.0
  %v240 = vadd.f32 %v215, 1.0
  %v241 = vadd.f32 %v217, 1.0
  %v242 = vadd.f32 %v219, 1.0
  %v243 = vadd.f32 %v221, 1.0
  %v244 = vadd.f32 %v223, 1.0
  %v245 = vadd.f32 %v225, 1.0
  %v246 = vadd.f32 %v227, 1.0
  %v247 = vadd.f32 %v229, 1.0
  %v248 = vadd.f32 %v231, 1.0
  %v249 = vadd.f32 %v233, 1.0
  %v250 = vrcp.pop %v234
  %v251 = vmul.f32 1.0, %v250
  %v252 = vrcp.pop %v235
  %v253 = vmul.f32 1.0, %v252
  %v254 = vrcp.pop %v236
  %v255 = vmul.f32 1.0, %v254
  %v256 = vrcp.pop %v237
  %v257 = vmul.f32 1.0, %v256
  %v258 = vrcp.pop %v238
  %v259 = vmul.f32 1.0, %v258
  %v260 = vrcp.pop %v239
  %v261 = vmul.f32 1.0, %v260
  %v262 = vrcp.pop %v240
  %v263 = vmul.f32 1.0, %v262
  %v264 = vrcp.pop %v241
  %v265 = vmul.f32 1.0, %v264
  %v266 = vrcp.pop %v242
  %v267 = vmul.f32 1.0, %v266
  %v268 = vrcp.pop %v243
  %v269 = vmul.f32 1.0, %v268
  %v270 = vrcp.pop %v244
  %v271 = vmul.f32 1.0, %v270
  %v272 = vrcp.pop %v245
  %v273 = vmul.f32 1.0, %v272
  %v274 = vrcp.pop %v246
  %v275 = vmul.f32 1.0, %v274
  %v276 = vrcp.pop %v247
  %v277 = vmul.f32 1.0, %v276
  %v278 = vrcp.pop %v248
  %v279 = vmul.f32 1.0, %v278
  %v280 = vrcp.pop %v249
  %v281 = vmul.f32 1.0, %v280
  %v282 = vmul.f32 %v124, %v251
  %v283 = vmul.f32 %v127, %v253
  %v284 = vmul.f32 %v132, %v255
  %v285 = vmul.f32 %v135, %v257
  %v286 = vmul.f32 %v140, %v259
  %v287 = vmul.f32 %v143, %v261
  %v288 = vmul.f32 %v148, %v263
  %v289 = vmul.f32 %v151, %v265
  %v290 = vmul.f32 %v156, %v267
  %v291 = vmul.f32 %v159, %v269
  %v292 = vmul.f32 %v164, %v271
  %v293 = vmul.f32 %v167, %v273
  %v294 = vmul.f32 %v172, %v275
  %v295 = vmul.f32 %v175, %v277
  %v296 = vmul.f32 %v180, %v279
  %v297 = vmul.f32 %v183, %v281
  %v298 = vpack.c.bf16 %v283, %v282
  %v299 = vpack.c.bf16 %v285, %v284
  %v300 = vpack.c.bf16 %v287, %v286
  %v301 = vpack.c.bf16 %v289, %v288
  %v302 = vpack.c.bf16 %v291, %v290
  %v303 = vpack.c.bf16 %v293, %v292
  %v304 = vpack.c.bf16 %v295, %v294
  %v305 = vpack.c.bf16 %v297, %v296
  %v306 = vld [vmem:[%s3] sm:$0xf]
  %v307 = vld [vmem:[%s3 + $0x4] sm:$0xf]
  %v308 = vld [vmem:[%s3 + $0x8] sm:$0xf]
  %v309 = vld [vmem:[%s3 + $0xc] sm:$0xf]
  %v310 = vld [vmem:[%s3 + $0x10] sm:$0xf]
  %v311 = vld [vmem:[%s3 + $0x14] sm:$0xf]
  %v312 = vld [vmem:[%s3 + $0x18] sm:$0xf]
  %v313 = vld [vmem:[%s3 + $0x1c] sm:$0xf]
  %v314 = vld [vmem:[%s3 + $0x20] sm:$0xf]
  %v315 = vld [vmem:[%s3 + $0x24] sm:$0xf]
  %v316 = vld [vmem:[%s3 + $0x28] sm:$0xf]
  %v317 = vld [vmem:[%s3 + $0x2c] sm:$0xf]
  %v318 = vld [vmem:[%s3 + $0x30] sm:$0xf]
  %v319 = vld [vmem:[%s3 + $0x34] sm:$0xf]
  %v320 = vld [vmem:[%s3 + $0x38] sm:$0xf]
  %v321 = vld [vmem:[%s3 + $0x3c] sm:$0xf]
  %v338 = vunpack.c.l.b16 %v306
  %v339 = vunpack.c.l.b16 %v307
  %v340 = vunpack.c.l.b16 %v308
  %v341 = vunpack.c.l.b16 %v309
  %v342 = vunpack.c.l.b16 %v310
  %v343 = vunpack.c.l.b16 %v311
  %v344 = vunpack.c.l.b16 %v312
  %v345 = vunpack.c.l.b16 %v313
  %v346 = vunpack.c.l.b16 %v314
  %v347 = vunpack.c.l.b16 %v315
  %v348 = vunpack.c.l.b16 %v316
  %v349 = vunpack.c.l.b16 %v317
  %v350 = vunpack.c.l.b16 %v318
  %v351 = vunpack.c.l.b16 %v319
  %v352 = vunpack.c.l.b16 %v320
  %v353 = vunpack.c.l.b16 %v321
  %v354 = vpack.c.b16 %v339, %v338
  %v355 = vpack.c.b16 %v341, %v340
  %v356 = vpack.c.b16 %v343, %v342
  %v357 = vpack.c.b16 %v345, %v344
  %v358 = vpack.c.b16 %v347, %v346
  %v359 = vpack.c.b16 %v349, %v348
  %v360 = vpack.c.b16 %v351, %v350
  %v361 = vpack.c.b16 %v353, %v352
  %370 = vmatprep.subr.bf16.mxu0 0
  %371 = vmatpush1.bf16.msra.mxu0 %v354
  %372 = vmatprep.subr.bf16.mxu0 0
  %373 = vmatpush1.bf16.msra.mxu0 %v355
  %374 = vmatprep.subr.bf16.mxu0 0
  %375 = vmatpush1.bf16.msra.mxu0 %v356
  %376 = vmatprep.subr.bf16.mxu0 0
  %377 = vmatpush1.bf16.msra.mxu0 %v357
  %378 = vmatprep.subr.bf16.mxu0 0
  %379 = vmatpush1.bf16.msra.mxu0 %v358
  %380 = vmatprep.subr.bf16.mxu0 0
  %381 = vmatpush1.bf16.msra.mxu0 %v359
  %382 = vmatprep.subr.bf16.mxu0 0
  %383 = vmatpush1.bf16.msra.mxu0 %v360
  %384 = vmatprep.subr.bf16.mxu0 0
  %385 = vmatpush1.bf16.msra.mxu0 %v361
  %386 = vmatprep.subr.bf16.mxu0 0
  %387 = vmatpush1.bf16.msra.mxu0 0
  %388 = vmatprep.subr.bf16.mxu0 0
  %389 = vmatpush1.bf16.msra.mxu0 0
  %390 = vmatprep.subr.bf16.mxu0 0
  %391 = vmatpush1.bf16.msra.mxu0 0
  %392 = vmatprep.subr.bf16.mxu0 0
  %393 = vmatpush1.bf16.msra.mxu0 0
  %394 = vmatprep.subr.bf16.mxu0 0
  %395 = vmatpush1.bf16.msra.mxu0 0
  %396 = vmatprep.subr.bf16.mxu0 0
  %397 = vmatpush1.bf16.msra.mxu0 0
  %398 = vmatprep.subr.bf16.mxu0 0
  %399 = vmatpush1.bf16.msra.mxu0 0
  %400 = vmatprep.subr.bf16.mxu0 0
  %401 = vmatpush1.bf16.msra.mxu0 0
  %402 = vmatprep.mubr.bf16.mxu0 0
  %403 = vmatmul.mubr.bf16.gmra.mrb[0].mxu0 %v298
  %v404 = vpop.f32.mrb[0].mxu0
  %v405 = vadd.f32 0.0, %v404
  %v406 = vpop.f32.mrb[0].mxu0
  %v407 = vpop.f32.mrb[0].mxu0
  %v408 = vadd.f32 0.0, %v407
  %v409 = vpop.f32.mrb[0].mxu0
  %410 = vmatprep.mubr.bf16.mxu0 0
  %411 = vmatmul.mubr.bf16.gmra.mrb[0].mxu0 %v299
  %v412 = vpop.f32.mrb[0].mxu0
  %v413 = vadd.f32 0.0, %v412
  %v414 = vpop.f32.mrb[0].mxu0
  %v415 = vpop.f32.mrb[0].mxu0
  %v416 = vadd.f32 0.0, %v415
  %v417 = vpop.f32.mrb[0].mxu0
  %418 = vmatprep.mubr.bf16.mxu0 0
  %419 = vmatmul.mubr.bf16.gmra.mrb[0].mxu0 %v300
  %v420 = vpop.f32.mrb[0].mxu0
  %v421 = vadd.f32 0.0, %v420
  %v422 = vpop.f32.mrb[0].mxu0
  %v423 = vpop.f32.mrb[0].mxu0
  %v424 = vadd.f32 0.0, %v423
  %v425 = vpop.f32.mrb[0].mxu0
  %426 = vmatprep.mubr.bf16.mxu0 0
  %427 = vmatmul.mubr.bf16.gmra.mrb[0].mxu0 %v301
  %v428 = vpop.f32.mrb[0].mxu0
  %v429 = vadd.f32 0.0, %v428
  %v430 = vpop.f32.mrb[0].mxu0
  %v431 = vpop.f32.mrb[0].mxu0
  %v432 = vadd.f32 0.0, %v431
  %v433 = vpop.f32.mrb[0].mxu0
  %434 = vmatprep.mubr.bf16.mxu0 0
  %435 = vmatmul.mubr.bf16.gmra.mrb[0].mxu0 %v302
  %v436 = vpop.f32.mrb[0].mxu0
  %v437 = vadd.f32 0.0, %v436
  %v438 = vpop.f32.mrb[0].mxu0
  %v439 = vpop.f32.mrb[0].mxu0
  %v440 = vadd.f32 0.0, %v439
  %v441 = vpop.f32.mrb[0].mxu0
  %442 = vmatprep.mubr.bf16.mxu0 0
  %443 = vmatmul.mubr.bf16.gmra.mrb[0].mxu0 %v303
  %v444 = vpop.f32.mrb[0].mxu0
  %v445 = vadd.f32 0.0, %v444
  %v446 = vpop.f32.mrb[0].mxu0
  %v447 = vpop.f32.mrb[0].mxu0
  %v448 = vadd.f32 0.0, %v447
  %v449 = vpop.f32.mrb[0].mxu0
  %450 = vmatprep.mubr.bf16.mxu0 0
  %451 = vmatmul.mubr.bf16.gmra.mrb[0].mxu0 %v304
  %v452 = vpop.f32.mrb[0].mxu0
  %v453 = vadd.f32 0.0, %v452
  %v454 = vpop.f32.mrb[0].mxu0
  %v455 = vpop.f32.mrb[0].mxu0
  %v456 = vadd.f32 0.0, %v455
  %v457 = vpop.f32.mrb[0].mxu0
  %458 = vmatprep.mubr.bf16.mxu0 0
  %459 = vmatmul.mubr.bf16.gmra.mrb[0].mxu0 %v305
  %v460 = vpop.f32.mrb[0].mxu0
  %v461 = vadd.f32 0.0, %v460
  %v462 = vpop.f32.mrb[0].mxu0
  %v463 = vpop.f32.mrb[0].mxu0
  %v464 = vadd.f32 0.0, %v463
  %v465 = vpop.f32.mrb[0].mxu0
  %466 = vdwg.mxu0
  %v467 = vxor.u32 %v405, 2147483648
  %v468 = vxor.u32 %v408, 2147483648
  %v469 = vxor.u32 %v413, 2147483648
  %v470 = vxor.u32 %v416, 2147483648
  %v471 = vxor.u32 %v421, 2147483648
  %v472 = vxor.u32 %v424, 2147483648
  %v473 = vxor.u32 %v429, 2147483648
  %v474 = vxor.u32 %v432, 2147483648
  %v475 = vxor.u32 %v437, 2147483648
  %v476 = vxor.u32 %v440, 2147483648
  %v477 = vxor.u32 %v445, 2147483648
  %v478 = vxor.u32 %v448, 2147483648
  %v479 = vxor.u32 %v453, 2147483648
  %v480 = vxor.u32 %v456, 2147483648
  %v481 = vxor.u32 %v461, 2147483648
  %v482 = vxor.u32 %v464, 2147483648
  %v483 = vmul.f32 %v467, 1.442695
  %v484 = vpow.pop %v483
  %v485 = vmul.f32 %v468, 1.442695
  %v486 = vpow.pop %v485
  %v487 = vmul.f32 %v469, 1.442695
  %v488 = vpow.pop %v487
  %v489 = vmul.f32 %v470, 1.442695
  %v490 = vpow.pop %v489
  %v491 = vmul.f32 %v471, 1.442695
  %v492 = vpow.pop %v491
  %v493 = vmul.f32 %v472, 1.442695
  %v494 = vpow.pop %v493
  %v495 = vmul.f32 %v473, 1.442695
  %v496 = vpow.pop %v495
  %v497 = vmul.f32 %v474, 1.442695
  %v498 = vpow.pop %v497
  %v499 = vmul.f32 %v475, 1.442695
  %v500 = vpow.pop %v499
  %v501 = vmul.f32 %v476, 1.442695
  %v502 = vpow.pop %v501
  %v503 = vmul.f32 %v477, 1.442695
  %v504 = vpow.pop %v503
  %v505 = vmul.f32 %v478, 1.442695
  %v506 = vpow.pop %v505
  %v507 = vmul.f32 %v479, 1.442695
  %v508 = vpow.pop %v507
  %v509 = vmul.f32 %v480, 1.442695
  %v510 = vpow.pop %v509
  %v511 = vmul.f32 %v481, 1.442695
  %v512 = vpow.pop %v511
  %v513 = vmul.f32 %v482, 1.442695
  %v514 = vpow.pop %v513
  %v515 = vadd.f32 %v484, 1.0
  %v516 = vadd.f32 %v486, 1.0
  %v517 = vadd.f32 %v488, 1.0
  %v518 = vadd.f32 %v490, 1.0
  %v519 = vadd.f32 %v492, 1.0
  %v520 = vadd.f32 %v494, 1.0
  %v521 = vadd.f32 %v496, 1.0
  %v522 = vadd.f32 %v498, 1.0
  %v523 = vadd.f32 %v500, 1.0
  %v524 = vadd.f32 %v502, 1.0
  %v525 = vadd.f32 %v504, 1.0
  %v526 = vadd.f32 %v506, 1.0
  %v527 = vadd.f32 %v508, 1.0
  %v528 = vadd.f32 %v510, 1.0
  %v529 = vadd.f32 %v512, 1.0
  %v530 = vadd.f32 %v514, 1.0
  %v531 = vrcp.pop %v515
  %v532 = vmul.f32 1.0, %v531
  %v533 = vrcp.pop %v516
  %v534 = vmul.f32 1.0, %v533
  %v535 = vrcp.pop %v517
  %v536 = vmul.f32 1.0, %v535
  %v537 = vrcp.pop %v518
  %v538 = vmul.f32 1.0, %v537
  %v539 = vrcp.pop %v519
  %v540 = vmul.f32 1.0, %v539
  %v541 = vrcp.pop %v520
  %v542 = vmul.f32 1.0, %v541
  %v543 = vrcp.pop %v521
  %v544 = vmul.f32 1.0, %v543
  %v545 = vrcp.pop %v522
  %v546 = vmul.f32 1.0, %v545
  %v547 = vrcp.pop %v523
  %v548 = vmul.f32 1.0, %v547
  %v549 = vrcp.pop %v524
  %v550 = vmul.f32 1.0, %v549
  %v551 = vrcp.pop %v525
  %v552 = vmul.f32 1.0, %v551
  %v553 = vrcp.pop %v526
  %v554 = vmul.f32 1.0, %v553
  %v555 = vrcp.pop %v527
  %v556 = vmul.f32 1.0, %v555
  %v557 = vrcp.pop %v528
  %v558 = vmul.f32 1.0, %v557
  %v559 = vrcp.pop %v529
  %v560 = vmul.f32 1.0, %v559
  %v561 = vrcp.pop %v530
  %v562 = vmul.f32 1.0, %v561
  %v563 = vmul.f32 %v405, %v532
  %v564 = vmul.f32 %v408, %v534
  %v565 = vmul.f32 %v413, %v536
  %v566 = vmul.f32 %v416, %v538
  %v567 = vmul.f32 %v421, %v540
  %v568 = vmul.f32 %v424, %v542
  %v569 = vmul.f32 %v429, %v544
  %v570 = vmul.f32 %v432, %v546
  %v571 = vmul.f32 %v437, %v548
  %v572 = vmul.f32 %v440, %v550
  %v573 = vmul.f32 %v445, %v552
  %v574 = vmul.f32 %v448, %v554
  %v575 = vmul.f32 %v453, %v556
  %v576 = vmul.f32 %v456, %v558
  %v577 = vmul.f32 %v461, %v560
  %v578 = vmul.f32 %v464, %v562
  %v579 = vld [vmem:[%s0] sm:$0xf]
  %v580 = vld [vmem:[%s0 + $0x4] sm:$0xf]
  %v581 = vld [vmem:[%s0 + $0x8] sm:$0xf]
  %v582 = vld [vmem:[%s0 + $0xc] sm:$0xf]
  %v583 = vld [vmem:[%s0 + $0x10] sm:$0xf]
  %v584 = vld [vmem:[%s0 + $0x14] sm:$0xf]
  %v585 = vld [vmem:[%s0 + $0x18] sm:$0xf]
  %v586 = vld [vmem:[%s0 + $0x1c] sm:$0xf]
  %v587 = vld [vmem:[%s0 + $0x20] sm:$0xf]
  %v588 = vld [vmem:[%s0 + $0x24] sm:$0xf]
  %v589 = vld [vmem:[%s0 + $0x28] sm:$0xf]
  %v590 = vld [vmem:[%s0 + $0x2c] sm:$0xf]
  %v591 = vld [vmem:[%s0 + $0x30] sm:$0xf]
  %v592 = vld [vmem:[%s0 + $0x34] sm:$0xf]
  %v593 = vld [vmem:[%s0 + $0x38] sm:$0xf]
  %v594 = vld [vmem:[%s0 + $0x3c] sm:$0xf]
  %v595 = vunpack.c.l.bf16 %v579
  %v596 = vunpack.c.l.bf16 %v580
  %v597 = vunpack.c.l.bf16 %v581
  %v598 = vunpack.c.l.bf16 %v582
  %v599 = vunpack.c.l.bf16 %v583
  %v600 = vunpack.c.l.bf16 %v584
  %v601 = vunpack.c.l.bf16 %v585
  %v602 = vunpack.c.l.bf16 %v586
  %v603 = vunpack.c.l.bf16 %v587
  %v604 = vunpack.c.l.bf16 %v588
  %v605 = vunpack.c.l.bf16 %v589
  %v606 = vunpack.c.l.bf16 %v590
  %v607 = vunpack.c.l.bf16 %v591
  %v608 = vunpack.c.l.bf16 %v592
  %v609 = vunpack.c.l.bf16 %v593
  %v610 = vunpack.c.l.bf16 %v594
  %v611 = vmul.f32 %v595, %v563
  %v612 = vmul.f32 %v596, %v564
  %v613 = vmul.f32 %v597, %v565
  %v614 = vmul.f32 %v598, %v566
  %v615 = vmul.f32 %v599, %v567
  %v616 = vmul.f32 %v600, %v568
  %v617 = vmul.f32 %v601, %v569
  %v618 = vmul.f32 %v602, %v570
  %v619 = vmul.f32 %v603, %v571
  %v620 = vmul.f32 %v604, %v572
  %v621 = vmul.f32 %v605, %v573
  %v622 = vmul.f32 %v606, %v574
  %v623 = vmul.f32 %v607, %v575
  %v624 = vmul.f32 %v608, %v576
  %v625 = vmul.f32 %v609, %v577
  %v626 = vmul.f32 %v610, %v578
  %v627 = vpack.c.bf16 %v612, %v611
  %v628 = vpack.c.bf16 %v614, %v613
  %v629 = vpack.c.bf16 %v616, %v615
  %v630 = vpack.c.bf16 %v618, %v617
  %v631 = vpack.c.bf16 %v620, %v619
  %v632 = vpack.c.bf16 %v622, %v621
  %v633 = vpack.c.bf16 %v624, %v623
  %v634 = vpack.c.bf16 %v626, %v625
  %v635 = vld [vmem:[%s4] sm:$0xf]
  %v636 = vld [vmem:[%s4 + $0x4] sm:$0xf]
  %v637 = vld [vmem:[%s4 + $0x8] sm:$0xf]
  %v638 = vld [vmem:[%s4 + $0xc] sm:$0xf]
  %v639 = vld [vmem:[%s4 + $0x10] sm:$0xf]
  %v640 = vld [vmem:[%s4 + $0x14] sm:$0xf]
  %v641 = vld [vmem:[%s4 + $0x18] sm:$0xf]
  %v642 = vld [vmem:[%s4 + $0x1c] sm:$0xf]
  %v643 = vld [vmem:[%s4 + $0x20] sm:$0xf]
  %v644 = vld [vmem:[%s4 + $0x24] sm:$0xf]
  %v645 = vld [vmem:[%s4 + $0x28] sm:$0xf]
  %v646 = vld [vmem:[%s4 + $0x2c] sm:$0xf]
  %v647 = vld [vmem:[%s4 + $0x30] sm:$0xf]
  %v648 = vld [vmem:[%s4 + $0x34] sm:$0xf]
  %v649 = vld [vmem:[%s4 + $0x38] sm:$0xf]
  %v650 = vld [vmem:[%s4 + $0x3c] sm:$0xf]
  %v651 = vld [vmem:[%s5] sm:$0x1]
  %v653 = vlaneseq
  %v654 = vshrl.u32 %v653, 7
  %v655 = vsub.s32 0, %v654
  %v656 = vrot.slane %v651, %v655
  %v674 = vunpack.c.l.b16 %v635
  %v675 = vunpack.c.l.b16 %v636
  %v676 = vunpack.c.l.b16 %v637
  %v677 = vunpack.c.l.b16 %v638
  %v678 = vunpack.c.l.b16 %v639
  %v679 = vunpack.c.l.b16 %v640
  %v680 = vunpack.c.l.b16 %v641
  %v681 = vunpack.c.l.b16 %v642
  %v682 = vunpack.c.l.b16 %v643
  %v683 = vunpack.c.l.b16 %v644
  %v684 = vunpack.c.l.b16 %v645
  %v685 = vunpack.c.l.b16 %v646
  %v686 = vunpack.c.l.b16 %v647
  %v687 = vunpack.c.l.b16 %v648
  %v688 = vunpack.c.l.b16 %v649
  %v689 = vunpack.c.l.b16 %v650
  %v690 = vpack.c.b16 %v675, %v674
  %v691 = vpack.c.b16 %v677, %v676
  %v692 = vpack.c.b16 %v679, %v678
  %v693 = vpack.c.b16 %v681, %v680
  %v694 = vpack.c.b16 %v683, %v682
  %v695 = vpack.c.b16 %v685, %v684
  %v696 = vpack.c.b16 %v687, %v686
  %v697 = vpack.c.b16 %v689, %v688
  %706 = vmatprep.subr.bf16.mxu0 0
  %707 = vmatpush1.bf16.msra.mxu0 %v690
  %708 = vmatprep.subr.bf16.mxu0 0
  %709 = vmatpush1.bf16.msra.mxu0 %v691
  %710 = vmatprep.subr.bf16.mxu0 0
  %711 = vmatpush1.bf16.msra.mxu0 %v692
  %712 = vmatprep.subr.bf16.mxu0 0
  %713 = vmatpush1.bf16.msra.mxu0 %v693
  %714 = vmatprep.subr.bf16.mxu0 0
  %715 = vmatpush1.bf16.msra.mxu0 %v694
  %716 = vmatprep.subr.bf16.mxu0 0
  %717 = vmatpush1.bf16.msra.mxu0 %v695
  %718 = vmatprep.subr.bf16.mxu0 0
  %719 = vmatpush1.bf16.msra.mxu0 %v696
  %720 = vmatprep.subr.bf16.mxu0 0
  %721 = vmatpush1.bf16.msra.mxu0 %v697
  %722 = vmatprep.subr.bf16.mxu0 0
  %723 = vmatpush1.bf16.msra.mxu0 0
  %724 = vmatprep.subr.bf16.mxu0 0
  %725 = vmatpush1.bf16.msra.mxu0 0
  %726 = vmatprep.subr.bf16.mxu0 0
  %727 = vmatpush1.bf16.msra.mxu0 0
  %728 = vmatprep.subr.bf16.mxu0 0
  %729 = vmatpush1.bf16.msra.mxu0 0
  %730 = vmatprep.subr.bf16.mxu0 0
  %731 = vmatpush1.bf16.msra.mxu0 0
  %732 = vmatprep.subr.bf16.mxu0 0
  %733 = vmatpush1.bf16.msra.mxu0 0
  %734 = vmatprep.subr.bf16.mxu0 0
  %735 = vmatpush1.bf16.msra.mxu0 0
  %736 = vmatprep.subr.bf16.mxu0 0
  %737 = vmatpush1.bf16.msra.mxu0 0
  %738 = vmatprep.mubr.bf16.mxu0 0
  %739 = vmatmul.mubr.bf16.gmra.mrb[0].mxu0 %v627
  %v740 = vpop.f32.mrb[0].mxu0
  %v741 = vadd.f32 %v656, %v740
  %v742 = vpop.f32.mrb[0].mxu0
  %v743 = vpop.f32.mrb[0].mxu0
  %v744 = vadd.f32 %v656, %v743
  %v745 = vpop.f32.mrb[0].mxu0
  %746 = vmatprep.mubr.bf16.mxu0 0
  %747 = vmatmul.mubr.bf16.gmra.mrb[0].mxu0 %v628
  %v748 = vpop.f32.mrb[0].mxu0
  %v749 = vadd.f32 %v656, %v748
  %v750 = vpop.f32.mrb[0].mxu0
  %v751 = vpop.f32.mrb[0].mxu0
  %v752 = vadd.f32 %v656, %v751
  %v753 = vpop.f32.mrb[0].mxu0
  %754 = vmatprep.mubr.bf16.mxu0 0
  %755 = vmatmul.mubr.bf16.gmra.mrb[0].mxu0 %v629
  %v756 = vpop.f32.mrb[0].mxu0
  %v757 = vadd.f32 %v656, %v756
  %v758 = vpop.f32.mrb[0].mxu0
  %v759 = vpop.f32.mrb[0].mxu0
  %v760 = vadd.f32 %v656, %v759
  %v761 = vpop.f32.mrb[0].mxu0
  %762 = vmatprep.mubr.bf16.mxu0 0
  %763 = vmatmul.mubr.bf16.gmra.mrb[0].mxu0 %v630
  %v764 = vpop.f32.mrb[0].mxu0
  %v765 = vadd.f32 %v656, %v764
  %v766 = vpop.f32.mrb[0].mxu0
  %v767 = vpop.f32.mrb[0].mxu0
  %v768 = vadd.f32 %v656, %v767
  %v769 = vpop.f32.mrb[0].mxu0
  %770 = vmatprep.mubr.bf16.mxu0 0
  %771 = vmatmul.mubr.bf16.gmra.mrb[0].mxu0 %v631
  %v772 = vpop.f32.mrb[0].mxu0
  %v773 = vadd.f32 %v656, %v772
  %v774 = vpop.f32.mrb[0].mxu0
  %v775 = vpop.f32.mrb[0].mxu0
  %v776 = vadd.f32 %v656, %v775
  %v777 = vpop.f32.mrb[0].mxu0
  %778 = vmatprep.mubr.bf16.mxu0 0
  %779 = vmatmul.mubr.bf16.gmra.mrb[0].mxu0 %v632
  %v780 = vpop.f32.mrb[0].mxu0
  %v781 = vadd.f32 %v656, %v780
  %v782 = vpop.f32.mrb[0].mxu0
  %v783 = vpop.f32.mrb[0].mxu0
  %v784 = vadd.f32 %v656, %v783
  %v785 = vpop.f32.mrb[0].mxu0
  %786 = vmatprep.mubr.bf16.mxu0 0
  %787 = vmatmul.mubr.bf16.gmra.mrb[0].mxu0 %v633
  %v788 = vpop.f32.mrb[0].mxu0
  %v789 = vadd.f32 %v656, %v788
  %v790 = vpop.f32.mrb[0].mxu0
  %v791 = vpop.f32.mrb[0].mxu0
  %v792 = vadd.f32 %v656, %v791
  %v793 = vpop.f32.mrb[0].mxu0
  %794 = vmatprep.mubr.bf16.mxu0 0
  %795 = vmatmul.mubr.bf16.gmra.mrb[0].mxu0 %v634
  %v796 = vpop.f32.mrb[0].mxu0
  %v797 = vadd.f32 %v656, %v796
  %v798 = vpop.f32.mrb[0].mxu0
  %v799 = vpop.f32.mrb[0].mxu0
  %v800 = vadd.f32 %v656, %v799
  %v801 = vpop.f32.mrb[0].mxu0
  %802 = vdwg.mxu0
  %v803 = vxor.u32 %v741, 2147483648
  %v804 = vxor.u32 %v744, 2147483648
  %v805 = vxor.u32 %v749, 2147483648
  %v806 = vxor.u32 %v752, 2147483648
  %v807 = vxor.u32 %v757, 2147483648
  %v808 = vxor.u32 %v760, 2147483648
  %v809 = vxor.u32 %v765, 2147483648
  %v810 = vxor.u32 %v768, 2147483648
  %v811 = vxor.u32 %v773, 2147483648
  %v812 = vxor.u32 %v776, 2147483648
  %v813 = vxor.u32 %v781, 2147483648
  %v814 = vxor.u32 %v784, 2147483648
  %v815 = vxor.u32 %v789, 2147483648
  %v816 = vxor.u32 %v792, 2147483648
  %v817 = vxor.u32 %v797, 2147483648
  %v818 = vxor.u32 %v800, 2147483648
  %v819 = vmul.f32 %v803, 1.442695
  %v820 = vpow.pop %v819
  %v821 = vmul.f32 %v804, 1.442695
  %v822 = vpow.pop %v821
  %v823 = vmul.f32 %v805, 1.442695
  %v824 = vpow.pop %v823
  %v825 = vmul.f32 %v806, 1.442695
  %v826 = vpow.pop %v825
  %v827 = vmul.f32 %v807, 1.442695
  %v828 = vpow.pop %v827
  %v829 = vmul.f32 %v808, 1.442695
  %v830 = vpow.pop %v829
  %v831 = vmul.f32 %v809, 1.442695
  %v832 = vpow.pop %v831
  %v833 = vmul.f32 %v810, 1.442695
  %v834 = vpow.pop %v833
  %v835 = vmul.f32 %v811, 1.442695
  %v836 = vpow.pop %v835
  %v837 = vmul.f32 %v812, 1.442695
  %v838 = vpow.pop %v837
  %v839 = vmul.f32 %v813, 1.442695
  %v840 = vpow.pop %v839
  %v841 = vmul.f32 %v814, 1.442695
  %v842 = vpow.pop %v841
  %v843 = vmul.f32 %v815, 1.442695
  %v844 = vpow.pop %v843
  %v845 = vmul.f32 %v816, 1.442695
  %v846 = vpow.pop %v845
  %v847 = vmul.f32 %v817, 1.442695
  %v848 = vpow.pop %v847
  %v849 = vmul.f32 %v818, 1.442695
  %v850 = vpow.pop %v849
  %v851 = vadd.f32 %v820, 1.0
  %v852 = vadd.f32 %v822, 1.0
  %v853 = vadd.f32 %v824, 1.0
  %v854 = vadd.f32 %v826, 1.0
  %v855 = vadd.f32 %v828, 1.0
  %v856 = vadd.f32 %v830, 1.0
  %v857 = vadd.f32 %v832, 1.0
  %v858 = vadd.f32 %v834, 1.0
  %v859 = vadd.f32 %v836, 1.0
  %v860 = vadd.f32 %v838, 1.0
  %v861 = vadd.f32 %v840, 1.0
  %v862 = vadd.f32 %v842, 1.0
  %v863 = vadd.f32 %v844, 1.0
  %v864 = vadd.f32 %v846, 1.0
  %v865 = vadd.f32 %v848, 1.0
  %v866 = vadd.f32 %v850, 1.0
  %v867 = vrcp.pop %v851
  %v868 = vmul.f32 1.0, %v867
  %v869 = vrcp.pop %v852
  %v870 = vmul.f32 1.0, %v869
  %v871 = vrcp.pop %v853
  %v872 = vmul.f32 1.0, %v871
  %v873 = vrcp.pop %v854
  %v874 = vmul.f32 1.0, %v873
  %v875 = vrcp.pop %v855
  %v876 = vmul.f32 1.0, %v875
  %v877 = vrcp.pop %v856
  %v878 = vmul.f32 1.0, %v877
  %v879 = vrcp.pop %v857
  %v880 = vmul.f32 1.0, %v879
  %v881 = vrcp.pop %v858
  %v882 = vmul.f32 1.0, %v881
  %v883 = vrcp.pop %v859
  %v884 = vmul.f32 1.0, %v883
  %v885 = vrcp.pop %v860
  %v886 = vmul.f32 1.0, %v885
  %v887 = vrcp.pop %v861
  %v888 = vmul.f32 1.0, %v887
  %v889 = vrcp.pop %v862
  %v890 = vmul.f32 1.0, %v889
  %v891 = vrcp.pop %v863
  %v892 = vmul.f32 1.0, %v891
  %v893 = vrcp.pop %v864
  %v894 = vmul.f32 1.0, %v893
  %v895 = vrcp.pop %v865
  %v896 = vmul.f32 1.0, %v895
  %v897 = vrcp.pop %v866
  %v898 = vmul.f32 1.0, %v897
  %v899 = vmul.f32 %v741, %v868
  %v900 = vmul.f32 %v744, %v870
  %v901 = vmul.f32 %v749, %v872
  %v902 = vmul.f32 %v752, %v874
  %v903 = vmul.f32 %v757, %v876
  %v904 = vmul.f32 %v760, %v878
  %v905 = vmul.f32 %v765, %v880
  %v906 = vmul.f32 %v768, %v882
  %v907 = vmul.f32 %v773, %v884
  %v908 = vmul.f32 %v776, %v886
  %v909 = vmul.f32 %v781, %v888
  %v910 = vmul.f32 %v784, %v890
  %v911 = vmul.f32 %v789, %v892
  %v912 = vmul.f32 %v792, %v894
  %v913 = vmul.f32 %v797, %v896
  %v914 = vmul.f32 %v800, %v898
  %915 = vst [vmem:[%s6] sm:$0xff] %v899
  %916 = vst [vmem:[%s6 + $0x8] sm:$0xff] %v900
  %917 = vst [vmem:[%s6 + $0x10] sm:$0xff] %v901
  %918 = vst [vmem:[%s6 + $0x18] sm:$0xff] %v902
  %919 = vst [vmem:[%s6 + $0x20] sm:$0xff] %v903
  %920 = vst [vmem:[%s6 + $0x28] sm:$0xff] %v904
  %921 = vst [vmem:[%s6 + $0x30] sm:$0xff] %v905
  %922 = vst [vmem:[%s6 + $0x38] sm:$0xff] %v906
  %923 = vst [vmem:[%s6 + $0x40] sm:$0xff] %v907
  %924 = vst [vmem:[%s6 + $0x48] sm:$0xff] %v908
  %925 = vst [vmem:[%s6 + $0x50] sm:$0xff] %v909
  %926 = vst [vmem:[%s6 + $0x58] sm:$0xff] %v910
  %927 = vst [vmem:[%s6 + $0x60] sm:$0xff] %v911
  %928 = vst [vmem:[%s6 + $0x68] sm:$0xff] %v912
  %929 = vst [vmem:[%s6 + $0x70] sm:$0xff] %v913
  %930 = vst [vmem:[%s6 + $0x78] sm:$0xff] %v914
  // Predicated region
  $region26: #{interaction_block_forward.4} parent=0 // pred_check
    _
  $region27: #{interaction_block_forward.4} parent=0 // pred_check_branch
    %932 = sbr.rel (0) target = $region29
  $region28: #{interaction_block_forward.4} parent=0 // pred_region
    _
  $region29: #{interaction_block_forward.4} parent=0 // pred_fallthru
    _
  // Predicated region
  $region30: #{interaction_block_forward.4} parent=0 // pred_check
    _
  $region31: #{interaction_block_forward.4} parent=0 // pred_check_branch
    %934 = sbr.rel (0) target = $region33
  $region32: #{interaction_block_forward.4} parent=0 // pred_region
    _
  $region33: #{interaction_block_forward.4} parent=0 // pred_fallthru
    _

// kernel: interaction_block_forward.5
$region0: #{interaction_block_forward.5}
  #allocation0 [shape = 'u32[]', space=smem, size = 0x4, offset = 0x4, fixed_abs, tag = 'smem constant byte address 0x4 - core index']
  #allocation1 [shape = 'u32[144,128]{1,0:T(1,128)}', space=vmem, size = 0x12000, scoped, tag = 'internal scratch']
  %s0 = inlined_call_operand.vmem [shape: f32[64,128], index: 0, kind: input, shape index: {}]
  %s1 = inlined_call_operand.vmem [shape: f32[64,128], index: 1, kind: input, shape index: {}]
  %s2 = inlined_call_operand.vmem [shape: bf16[2,128,128], index: 2, kind: input, shape index: {}]
  %s3 = inlined_call_operand.vmem [shape: f32[2,1,128], index: 3, kind: input, shape index: {}]
  %s4 = inlined_call_operand.vmem [shape: bf16[2,128,128], index: 4, kind: input, shape index: {}]
  %s5 = inlined_call_operand.vmem [shape: f32[2,1,128], index: 5, kind: input, shape index: {}]
  %s6 = inlined_call_operand.hbm [shape: f32[64,128], index: 6, kind: output, shape index: {}]
  %s7 = sld [smem:[#allocation0]]
  $region34: #{interaction_block_forward.5} parent=0
    _
  %s9 = ssub.s32 1, %s7
  %s10 = scalar_select 0, %s9, %s7
  $region1: #{interaction_block_forward.5} parent=0
    #allocation2 [shape = 'u8[32768]{0}', space=vmem, size = 0x8000, scoped, tag = 'output window, operand 0, single buffered']
    #allocation3 [shape = 's32[1]{0}', space=sflag, size = 0x4, scoped, tag = 'scoped memory for interaction_block_forward.5']
    %11 = vsyncpa [#allocation3], 0
    // Predicated region
    $region2: #{interaction_block_forward.5} parent=1 // pred_check
      _
    $region3: #{interaction_block_forward.5} parent=1 // pred_check_branch
      %13 = sbr.rel (0) target = $region5
    $region4: #{interaction_block_forward.5} parent=1 // pred_region
      _
    $region5: #{interaction_block_forward.5} parent=1 // pred_fallthru
      _
    // Predicated region
    $region6: #{interaction_block_forward.5} parent=1 // pred_check
      _
    $region7: #{interaction_block_forward.5} parent=1 // pred_check_branch
      %15 = sbr.rel (0) target = $region9
    $region8: #{interaction_block_forward.5} parent=1 // pred_region
      _
    $region9: #{interaction_block_forward.5} parent=1 // pred_fallthru
      _
    // Predicated region
    $region10: #{interaction_block_forward.5} parent=1 // pred_check
      _
    $region11: #{interaction_block_forward.5} parent=1 // pred_check_branch
      %17 = sbr.rel (0) target = $region13
    $region12: #{interaction_block_forward.5} parent=1 // pred_region
      _
    $region13: #{interaction_block_forward.5} parent=1 // pred_fallthru
      _
    // Predicated region
    $region14: #{interaction_block_forward.5} parent=1 // pred_check
      _
    $region15: #{interaction_block_forward.5} parent=1 // pred_check_branch
      %19 = sbr.rel (0) target = $region17
    $region16: #{interaction_block_forward.5} parent=1 // pred_region
      _
    $region17: #{interaction_block_forward.5} parent=1 // pred_fallthru
      _
    // Predicated region
    $region18: #{interaction_block_forward.5} parent=1 // pred_check
      _
    $region19: #{interaction_block_forward.5} parent=1 // pred_check_branch
      %21 = sbr.rel (0) target = $region21
    $region20: #{interaction_block_forward.5} parent=1 // pred_region
      _
    $region21: #{interaction_block_forward.5} parent=1 // pred_fallthru
      _
    // Predicated region
    $region22: #{interaction_block_forward.5} parent=1 // pred_check
      _
    $region23: #{interaction_block_forward.5} parent=1 // pred_check_branch
      %23 = sbr.rel (0) target = $region25
    $region24: #{interaction_block_forward.5} parent=1 // pred_region
      _
    $region25: #{interaction_block_forward.5} parent=1 // pred_fallthru
      _
    %v25 = vld [vmem:[%s0] sm:$0xff]
    %v26 = vld [vmem:[%s0 + $0x8] sm:$0xff]
    %v27 = vld [vmem:[%s0 + $0x10] sm:$0xff]
    %v28 = vld [vmem:[%s0 + $0x18] sm:$0xff]
    %v29 = vld [vmem:[%s0 + $0x20] sm:$0xff]
    %v30 = vld [vmem:[%s0 + $0x28] sm:$0xff]
    %v31 = vld [vmem:[%s0 + $0x30] sm:$0xff]
    %v32 = vld [vmem:[%s0 + $0x38] sm:$0xff]
    %v33 = vpack.c.bf16 %v26, %v25
    %v34 = vpack.c.bf16 %v28, %v27
    %v35 = vpack.c.bf16 %v30, %v29
    %v36 = vpack.c.bf16 %v32, %v31
    %v37 = vld [vmem:[%s2] sm:$0xf]
    %v38 = vld [vmem:[%s2 + $0x4] sm:$0xf]
    %v39 = vld [vmem:[%s2 + $0x8] sm:$0xf]
    %v40 = vld [vmem:[%s2 + $0xc] sm:$0xf]
    %v41 = vld [vmem:[%s2 + $0x10] sm:$0xf]
    %v42 = vld [vmem:[%s2 + $0x14] sm:$0xf]
    %v43 = vld [vmem:[%s2 + $0x18] sm:$0xf]
    %v44 = vld [vmem:[%s2 + $0x1c] sm:$0xf]
    %v45 = vld [vmem:[%s2 + $0x20] sm:$0xf]
    %v46 = vld [vmem:[%s2 + $0x24] sm:$0xf]
    %v47 = vld [vmem:[%s2 + $0x28] sm:$0xf]
    %v48 = vld [vmem:[%s2 + $0x2c] sm:$0xf]
    %v49 = vld [vmem:[%s2 + $0x30] sm:$0xf]
    %v50 = vld [vmem:[%s2 + $0x34] sm:$0xf]
    %v51 = vld [vmem:[%s2 + $0x38] sm:$0xf]
    %v52 = vld [vmem:[%s2 + $0x3c] sm:$0xf]
    %v53 = vld [vmem:[%s3] sm:$0x1]
    %v55 = vlaneseq
    %v56 = vshrl.u32 %v55, 7
    %v57 = vsub.s32 0, %v56
    %v58 = vrot.slane %v53, %v57
    %v76 = vunpack.c.l.b16 %v37
    %v77 = vunpack.c.l.b16 %v38
    %v78 = vunpack.c.l.b16 %v39
    %v79 = vunpack.c.l.b16 %v40
    %v80 = vunpack.c.l.b16 %v41
    %v81 = vunpack.c.l.b16 %v42
    %v82 = vunpack.c.l.b16 %v43
    %v83 = vunpack.c.l.b16 %v44
    %v84 = vunpack.c.l.b16 %v45
    %v85 = vunpack.c.l.b16 %v46
    %v86 = vunpack.c.l.b16 %v47
    %v87 = vunpack.c.l.b16 %v48
    %v88 = vunpack.c.l.b16 %v49
    %v89 = vunpack.c.l.b16 %v50
    %v90 = vunpack.c.l.b16 %v51
    %v91 = vunpack.c.l.b16 %v52
    %v92 = vpack.c.b16 %v77, %v76
    %v93 = vpack.c.b16 %v79, %v78
    %v94 = vpack.c.b16 %v81, %v80
    %v95 = vpack.c.b16 %v83, %v82
    %v96 = vpack.c.b16 %v85, %v84
    %v97 = vpack.c.b16 %v87, %v86
    %v98 = vpack.c.b16 %v89, %v88
    %v99 = vpack.c.b16 %v91, %v90
    %108 = vmatprep.subr.bf16.mxu0 0
    %109 = vmatpush1.bf16.msra.mxu0 %v92
    %110 = vmatprep.subr.bf16.mxu0 0
    %111 = vmatpush1.bf16.msra.mxu0 %v93
    %112 = vmatprep.subr.bf16.mxu0 0
    %113 = vmatpush1.bf16.msra.mxu0 %v94
    %114 = vmatprep.subr.bf16.mxu0 0
    %115 = vmatpush1.bf16.msra.mxu0 %v95
    %116 = vmatprep.subr.bf16.mxu0 0
    %117 = vmatpush1.bf16.msra.mxu0 %v96
    %118 = vmatprep.subr.bf16.mxu0 0
    %119 = vmatpush1.bf16.msra.mxu0 %v97
    %120 = vmatprep.subr.bf16.mxu0 0
    %121 = vmatpush1.bf16.msra.mxu0 %v98
    %122 = vmatprep.subr.bf16.mxu0 0
    %123 = vmatpush1.bf16.msra.mxu0 %v99
    %124 = vmatprep.subr.bf16.mxu0 0
    %125 = vmatpush1.bf16.msra.mxu0 0
    %126 = vmatprep.subr.bf16.mxu0 0
    %127 = vmatpush1.bf16.msra.mxu0 0
    %128 = vmatprep.subr.bf16.mxu0 0
    %129 = vmatpush1.bf16.msra.mxu0 0
    %130 = vmatprep.subr.bf16.mxu0 0
    %131 = vmatpush1.bf16.msra.mxu0 0
    %132 = vmatprep.subr.bf16.mxu0 0
    %133 = vmatpush1.bf16.msra.mxu0 0
    %134 = vmatprep.subr.bf16.mxu0 0
    %135 = vmatpush1.bf16.msra.mxu0 0
    %136 = vmatprep.subr.bf16.mxu0 0
    %137 = vmatpush1.bf16.msra.mxu0 0
    %138 = vmatprep.subr.bf16.mxu0 0
    %139 = vmatpush1.bf16.msra.mxu0 0
    %140 = vmatprep.mubr.bf16.mxu0 0
    %141 = vmatmul.mubr.bf16.gmra.mrb[0].mxu0 %v33
    %v142 = vpop.f32.mrb[0].mxu0
    %v143 = vadd.f32 %v58, %v142
    %v144 = vpop.f32.mrb[0].mxu0
    %v145 = vpop.f32.mrb[0].mxu0
    %v146 = vadd.f32 %v58, %v145
    %v147 = vpop.f32.mrb[0].mxu0
    %148 = vmatprep.mubr.bf16.mxu0 0
    %149 = vmatmul.mubr.bf16.gmra.mrb[0].mxu0 %v34
    %v150 = vpop.f32.mrb[0].mxu0
    %v151 = vadd.f32 %v58, %v150
    %v152 = vpop.f32.mrb[0].mxu0
    %v153 = vpop.f32.mrb[0].mxu0
    %v154 = vadd.f32 %v58, %v153
    %v155 = vpop.f32.mrb[0].mxu0
    %156 = vmatprep.mubr.bf16.mxu0 0
    %157 = vmatmul.mubr.bf16.gmra.mrb[0].mxu0 %v35
    %v158 = vpop.f32.mrb[0].mxu0
    %v159 = vadd.f32 %v58, %v158
    %v160 = vpop.f32.mrb[0].mxu0
    %v161 = vpop.f32.mrb[0].mxu0
    %v162 = vadd.f32 %v58, %v161
    %v163 = vpop.f32.mrb[0].mxu0
    %164 = vmatprep.mubr.bf16.mxu0 0
    %165 = vmatmul.mubr.bf16.gmra.mrb[0].mxu0 %v36
    %v166 = vpop.f32.mrb[0].mxu0
    %v167 = vadd.f32 %v58, %v166
    %v168 = vpop.f32.mrb[0].mxu0
    %v169 = vpop.f32.mrb[0].mxu0
    %v170 = vadd.f32 %v58, %v169
    %v171 = vpop.f32.mrb[0].mxu0
    %172 = vdwg.mxu0
    %v173 = vxor.u32 %v143, 2147483648
    %v174 = vxor.u32 %v146, 2147483648
    %v175 = vxor.u32 %v151, 2147483648
    %v176 = vxor.u32 %v154, 2147483648
    %v177 = vxor.u32 %v159, 2147483648
    %v178 = vxor.u32 %v162, 2147483648
    %v179 = vxor.u32 %v167, 2147483648
    %v180 = vxor.u32 %v170, 2147483648
    %v181 = vmul.f32 %v173, 1.442695
    %v182 = vpow.pop %v181
    %v183 = vmul.f32 %v174, 1.442695
    %v184 = vpow.pop %v183
    %v185 = vmul.f32 %v175, 1.442695
    %v186 = vpow.pop %v185
    %v187 = vmul.f32 %v176, 1.442695
    %v188 = vpow.pop %v187
    %v189 = vmul.f32 %v177, 1.442695
    %v190 = vpow.pop %v189
    %v191 = vmul.f32 %v178, 1.442695
    %v192 = vpow.pop %v191
    %v193 = vmul.f32 %v179, 1.442695
    %v194 = vpow.pop %v193
    %v195 = vmul.f32 %v180, 1.442695
    %v196 = vpow.pop %v195
    %v197 = vadd.f32 %v182, 1.0
    %v198 = vadd.f32 %v184, 1.0
    %v199 = vadd.f32 %v186, 1.0
    %v200 = vadd.f32 %v188, 1.0
    %v201 = vadd.f32 %v190, 1.0
    %v202 = vadd.f32 %v192, 1.0
    %v203 = vadd.f32 %v194, 1.0
    %v204 = vadd.f32 %v196, 1.0
    %v205 = vrcp.pop %v197
    %v206 = vmul.f32 1.0, %v205
    %v207 = vrcp.pop %v198
    %v208 = vmul.f32 1.0, %v207
    %v209 = vrcp.pop %v199
    %v210 = vmul.f32 1.0, %v209
    %v211 = vrcp.pop %v200
    %v212 = vmul.f32 1.0, %v211
    %v213 = vrcp.pop %v201
    %v214 = vmul.f32 1.0, %v213
    %v215 = vrcp.pop %v202
    %v216 = vmul.f32 1.0, %v215
    %v217 = vrcp.pop %v203
    %v218 = vmul.f32 1.0, %v217
    %v219 = vrcp.pop %v204
    %v220 = vmul.f32 1.0, %v219
    %v221 = vmul.f32 %v143, %v206
    %v222 = vmul.f32 %v146, %v208
    %v223 = vmul.f32 %v151, %v210
    %v224 = vmul.f32 %v154, %v212
    %v225 = vmul.f32 %v159, %v214
    %v226 = vmul.f32 %v162, %v216
    %v227 = vmul.f32 %v167, %v218
    %v228 = vmul.f32 %v170, %v220
    %v229 = vpack.c.bf16 %v222, %v221
    %v230 = vpack.c.bf16 %v224, %v223
    %v231 = vpack.c.bf16 %v226, %v225
    %v232 = vpack.c.bf16 %v228, %v227
    %v233 = vld [vmem:[%s4] sm:$0xf]
    %v234 = vld [vmem:[%s4 + $0x4] sm:$0xf]
    %v235 = vld [vmem:[%s4 + $0x8] sm:$0xf]
    %v236 = vld [vmem:[%s4 + $0xc] sm:$0xf]
    %v237 = vld [vmem:[%s4 + $0x10] sm:$0xf]
    %v238 = vld [vmem:[%s4 + $0x14] sm:$0xf]
    %v239 = vld [vmem:[%s4 + $0x18] sm:$0xf]
    %v240 = vld [vmem:[%s4 + $0x1c] sm:$0xf]
    %v241 = vld [vmem:[%s4 + $0x20] sm:$0xf]
    %v242 = vld [vmem:[%s4 + $0x24] sm:$0xf]
    %v243 = vld [vmem:[%s4 + $0x28] sm:$0xf]
    %v244 = vld [vmem:[%s4 + $0x2c] sm:$0xf]
    %v245 = vld [vmem:[%s4 + $0x30] sm:$0xf]
    %v246 = vld [vmem:[%s4 + $0x34] sm:$0xf]
    %v247 = vld [vmem:[%s4 + $0x38] sm:$0xf]
    %v248 = vld [vmem:[%s4 + $0x3c] sm:$0xf]
    %v249 = vld [vmem:[%s5] sm:$0x1]
    %v251 = vlaneseq
    %v252 = vshrl.u32 %v251, 7
    %v253 = vsub.s32 0, %v252
    %v254 = vrot.slane %v249, %v253
    %v272 = vunpack.c.l.b16 %v233
    %v273 = vunpack.c.l.b16 %v234
    %v274 = vunpack.c.l.b16 %v235
    %v275 = vunpack.c.l.b16 %v236
    %v276 = vunpack.c.l.b16 %v237
    %v277 = vunpack.c.l.b16 %v238
    %v278 = vunpack.c.l.b16 %v239
    %v279 = vunpack.c.l.b16 %v240
    %v280 = vunpack.c.l.b16 %v241
    %v281 = vunpack.c.l.b16 %v242
    %v282 = vunpack.c.l.b16 %v243
    %v283 = vunpack.c.l.b16 %v244
    %v284 = vunpack.c.l.b16 %v245
    %v285 = vunpack.c.l.b16 %v246
    %v286 = vunpack.c.l.b16 %v247
    %v287 = vunpack.c.l.b16 %v248
    %v288 = vpack.c.b16 %v273, %v272
    %v289 = vpack.c.b16 %v275, %v274
    %v290 = vpack.c.b16 %v277, %v276
    %v291 = vpack.c.b16 %v279, %v278
    %v292 = vpack.c.b16 %v281, %v280
    %v293 = vpack.c.b16 %v283, %v282
    %v294 = vpack.c.b16 %v285, %v284
    %v295 = vpack.c.b16 %v287, %v286
    %304 = vmatprep.subr.bf16.mxu0 0
    %305 = vmatpush1.bf16.msra.mxu0 %v288
    %306 = vmatprep.subr.bf16.mxu0 0
    %307 = vmatpush1.bf16.msra.mxu0 %v289
    %308 = vmatprep.subr.bf16.mxu0 0
    %309 = vmatpush1.bf16.msra.mxu0 %v290
    %310 = vmatprep.subr.bf16.mxu0 0
    %311 = vmatpush1.bf16.msra.mxu0 %v291
    %312 = vmatprep.subr.bf16.mxu0 0
    %313 = vmatpush1.bf16.msra.mxu0 %v292
    %314 = vmatprep.subr.bf16.mxu0 0
    %315 = vmatpush1.bf16.msra.mxu0 %v293
    %316 = vmatprep.subr.bf16.mxu0 0
    %317 = vmatpush1.bf16.msra.mxu0 %v294
    %318 = vmatprep.subr.bf16.mxu0 0
    %319 = vmatpush1.bf16.msra.mxu0 %v295
    %320 = vmatprep.subr.bf16.mxu0 0
    %321 = vmatpush1.bf16.msra.mxu0 0
    %322 = vmatprep.subr.bf16.mxu0 0
    %323 = vmatpush1.bf16.msra.mxu0 0
    %324 = vmatprep.subr.bf16.mxu0 0
    %325 = vmatpush1.bf16.msra.mxu0 0
    %326 = vmatprep.subr.bf16.mxu0 0
    %327 = vmatpush1.bf16.msra.mxu0 0
    %328 = vmatprep.subr.bf16.mxu0 0
    %329 = vmatpush1.bf16.msra.mxu0 0
    %330 = vmatprep.subr.bf16.mxu0 0
    %331 = vmatpush1.bf16.msra.mxu0 0
    %332 = vmatprep.subr.bf16.mxu0 0
    %333 = vmatpush1.bf16.msra.mxu0 0
    %334 = vmatprep.subr.bf16.mxu0 0
    %335 = vmatpush1.bf16.msra.mxu0 0
    %336 = vmatprep.mubr.bf16.mxu0 0
    %337 = vmatmul.mubr.bf16.gmra.mrb[0].mxu0 %v229
    %v338 = vpop.f32.mrb[0].mxu0
    %v339 = vadd.f32 %v254, %v338
    %v340 = vpop.f32.mrb[0].mxu0
    %v341 = vpop.f32.mrb[0].mxu0
    %v342 = vadd.f32 %v254, %v341
    %v343 = vpop.f32.mrb[0].mxu0
    %344 = vmatprep.mubr.bf16.mxu0 0
    %345 = vmatmul.mubr.bf16.gmra.mrb[0].mxu0 %v230
    %v346 = vpop.f32.mrb[0].mxu0
    %v347 = vadd.f32 %v254, %v346
    %v348 = vpop.f32.mrb[0].mxu0
    %v349 = vpop.f32.mrb[0].mxu0
    %v350 = vadd.f32 %v254, %v349
    %v351 = vpop.f32.mrb[0].mxu0
    %352 = vmatprep.mubr.bf16.mxu0 0
    %353 = vmatmul.mubr.bf16.gmra.mrb[0].mxu0 %v231
    %v354 = vpop.f32.mrb[0].mxu0
    %v355 = vadd.f32 %v254, %v354
    %v356 = vpop.f32.mrb[0].mxu0
    %v357 = vpop.f32.mrb[0].mxu0
    %v358 = vadd.f32 %v254, %v357
    %v359 = vpop.f32.mrb[0].mxu0
    %360 = vmatprep.mubr.bf16.mxu0 0
    %361 = vmatmul.mubr.bf16.gmra.mrb[0].mxu0 %v232
    %v362 = vpop.f32.mrb[0].mxu0
    %v363 = vadd.f32 %v254, %v362
    %v364 = vpop.f32.mrb[0].mxu0
    %v365 = vpop.f32.mrb[0].mxu0
    %v366 = vadd.f32 %v254, %v365
    %v367 = vpop.f32.mrb[0].mxu0
    %368 = vdwg.mxu0
    %v369 = vxor.u32 %v339, 2147483648
    %v370 = vxor.u32 %v342, 2147483648
    %v371 = vxor.u32 %v347, 2147483648
    %v372 = vxor.u32 %v350, 2147483648
    %v373 = vxor.u32 %v355, 2147483648
    %v374 = vxor.u32 %v358, 2147483648
    %v375 = vxor.u32 %v363, 2147483648
    %v376 = vxor.u32 %v366, 2147483648
    %v377 = vmul.f32 %v369, 1.442695
    %v378 = vpow.pop %v377
    %v379 = vmul.f32 %v370, 1.442695
    %v380 = vpow.pop %v379
    %v381 = vmul.f32 %v371, 1.442695
    %v382 = vpow.pop %v381
    %v383 = vmul.f32 %v372, 1.442695
    %v384 = vpow.pop %v383
    %v385 = vmul.f32 %v373, 1.442695
    %v386 = vpow.pop %v385
    %v387 = vmul.f32 %v374, 1.442695
    %v388 = vpow.pop %v387
    %v389 = vmul.f32 %v375, 1.442695
    %v390 = vpow.pop %v389
    %v391 = vmul.f32 %v376, 1.442695
    %v392 = vpow.pop %v391
    %v393 = vadd.f32 %v378, 1.0
    %v394 = vadd.f32 %v380, 1.0
    %v395 = vadd.f32 %v382, 1.0
    %v396 = vadd.f32 %v384, 1.0
    %v397 = vadd.f32 %v386, 1.0
    %v398 = vadd.f32 %v388, 1.0
    %v399 = vadd.f32 %v390, 1.0
    %v400 = vadd.f32 %v392, 1.0
    %v401 = vrcp.pop %v393
    %v402 = vmul.f32 1.0, %v401
    %v403 = vrcp.pop %v394
    %v404 = vmul.f32 1.0, %v403
    %v405 = vrcp.pop %v395
    %v406 = vmul.f32 1.0, %v405
    %v407 = vrcp.pop %v396
    %v408 = vmul.f32 1.0, %v407
    %v409 = vrcp.pop %v397
    %v410 = vmul.f32 1.0, %v409
    %v411 = vrcp.pop %v398
    %v412 = vmul.f32 1.0, %v411
    %v413 = vrcp.pop %v399
    %v414 = vmul.f32 1.0, %v413
    %v415 = vrcp.pop %v400
    %v416 = vmul.f32 1.0, %v415
    %v417 = vmul.f32 %v339, %v402
    %v418 = vmul.f32 %v342, %v404
    %v419 = vmul.f32 %v347, %v406
    %v420 = vmul.f32 %v350, %v408
    %v421 = vmul.f32 %v355, %v410
    %v422 = vmul.f32 %v358, %v412
    %v423 = vmul.f32 %v363, %v414
    %v424 = vmul.f32 %v366, %v416
    %v425 = vadd.f32 %v25, %v417
    %v426 = vadd.f32 %v26, %v418
    %v427 = vadd.f32 %v27, %v419
    %v428 = vadd.f32 %v28, %v420
    %v429 = vadd.f32 %v29, %v421
    %v430 = vadd.f32 %v30, %v422
    %v431 = vadd.f32 %v31, %v423
    %v432 = vadd.f32 %v32, %v424
    %v433 = vpack.c.bf16 %v426, %v425
    %v434 = vpack.c.bf16 %v428, %v427
    %v435 = vpack.c.bf16 %v430, %v429
    %v436 = vpack.c.bf16 %v432, %v431
    %s437 = scalar_lea.vmem %s2, 64
    %v438 = vld [vmem:[%s437] sm:$0xf]
    %v439 = vld [vmem:[%s437 + $0x4] sm:$0xf]
    %v440 = vld [vmem:[%s437 + $0x8] sm:$0xf]
    %v441 = vld [vmem:[%s437 + $0xc] sm:$0xf]
    %v442 = vld [vmem:[%s437 + $0x10] sm:$0xf]
    %v443 = vld [vmem:[%s437 + $0x14] sm:$0xf]
    %v444 = vld [vmem:[%s437 + $0x18] sm:$0xf]
    %v445 = vld [vmem:[%s437 + $0x1c] sm:$0xf]
    %v446 = vld [vmem:[%s437 + $0x20] sm:$0xf]
    %v447 = vld [vmem:[%s437 + $0x24] sm:$0xf]
    %v448 = vld [vmem:[%s437 + $0x28] sm:$0xf]
    %v449 = vld [vmem:[%s437 + $0x2c] sm:$0xf]
    %v450 = vld [vmem:[%s437 + $0x30] sm:$0xf]
    %v451 = vld [vmem:[%s437 + $0x34] sm:$0xf]
    %v452 = vld [vmem:[%s437 + $0x38] sm:$0xf]
    %v453 = vld [vmem:[%s437 + $0x3c] sm:$0xf]
    %s454 = scalar_lea.vmem %s3, 1
    %v455 = vld [vmem:[%s454] sm:$0x1]
    %v457 = vlaneseq
    %v458 = vshrl.u32 %v457, 7
    %v459 = vsub.s32 0, %v458
    %v460 = vrot.slane %v455, %v459
    %v478 = vunpack.c.l.b16 %v438
    %v479 = vunpack.c.l.b16 %v439
    %v480 = vunpack.c.l.b16 %v440
    %v481 = vunpack.c.l.b16 %v441
    %v482 = vunpack.c.l.b16 %v442
    %v483 = vunpack.c.l.b16 %v443
    %v484 = vunpack.c.l.b16 %v444
    %v485 = vunpack.c.l.b16 %v445
    %v486 = vunpack.c.l.b16 %v446
    %v487 = vunpack.c.l.b16 %v447
    %v488 = vunpack.c.l.b16 %v448
    %v489 = vunpack.c.l.b16 %v449
    %v490 = vunpack.c.l.b16 %v450
    %v491 = vunpack.c.l.b16 %v451
    %v492 = vunpack.c.l.b16 %v452
    %v493 = vunpack.c.l.b16 %v453
    %v494 = vpack.c.b16 %v479, %v478
    %v495 = vpack.c.b16 %v481, %v480
    %v496 = vpack.c.b16 %v483, %v482
    %v497 = vpack.c.b16 %v485, %v484
    %v498 = vpack.c.b16 %v487, %v486
    %v499 = vpack.c.b16 %v489, %v488
    %v500 = vpack.c.b16 %v491, %v490
    %v501 = vpack.c.b16 %v493, %v492
    %510 = vmatprep.subr.bf16.mxu0 0
    %511 = vmatpush1.bf16.msra.mxu0 %v494
    %512 = vmatprep.subr.bf16.mxu0 0
    %513 = vmatpush1.bf16.msra.mxu0 %v495
    %514 = vmatprep.subr.bf16.mxu0 0
    %515 = vmatpush1.bf16.msra.mxu0 %v496
    %516 = vmatprep.subr.bf16.mxu0 0
    %517 = vmatpush1.bf16.msra.mxu0 %v497
    %518 = vmatprep.subr.bf16.mxu0 0
    %519 = vmatpush1.bf16.msra.mxu0 %v498
    %520 = vmatprep.subr.bf16.mxu0 0
    %521 = vmatpush1.bf16.msra.mxu0 %v499
    %522 = vmatprep.subr.bf16.mxu0 0
    %523 = vmatpush1.bf16.msra.mxu0 %v500
    %524 = vmatprep.subr.bf16.mxu0 0
    %525 = vmatpush1.bf16.msra.mxu0 %v501
    %526 = vmatprep.subr.bf16.mxu0 0
    %527 = vmatpush1.bf16.msra.mxu0 0
    %528 = vmatprep.subr.bf16.mxu0 0
    %529 = vmatpush1.bf16.msra.mxu0 0
    %530 = vmatprep.subr.bf16.mxu0 0
    %531 = vmatpush1.bf16.msra.mxu0 0
    %532 = vmatprep.subr.bf16.mxu0 0
    %533 = vmatpush1.bf16.msra.mxu0 0
    %534 = vmatprep.subr.bf16.mxu0 0
    %535 = vmatpush1.bf16.msra.mxu0 0
    %536 = vmatprep.subr.bf16.mxu0 0
    %537 = vmatpush1.bf16.msra.mxu0 0
    %538 = vmatprep.subr.bf16.mxu0 0
    %539 = vmatpush1.bf16.msra.mxu0 0
    %540 = vmatprep.subr.bf16.mxu0 0
    %541 = vmatpush1.bf16.msra.mxu0 0
    %542 = vmatprep.mubr.bf16.mxu0 0
    %543 = vmatmul.mubr.bf16.gmra.mrb[0].mxu0 %v433
    %v544 = vpop.f32.mrb[0].mxu0
    %v545 = vadd.f32 %v460, %v544
    %v546 = vpop.f32.mrb[0].mxu0
    %v547 = vpop.f32.mrb[0].mxu0
    %v548 = vadd.f32 %v460, %v547
    %v549 = vpop.f32.mrb[0].mxu0
    %550 = vmatprep.mubr.bf16.mxu0 0
    %551 = vmatmul.mubr.bf16.gmra.mrb[0].mxu0 %v434
    %v552 = vpop.f32.mrb[0].mxu0
    %v553 = vadd.f32 %v460, %v552
    %v554 = vpop.f32.mrb[0].mxu0
    %v555 = vpop.f32.mrb[0].mxu0
    %v556 = vadd.f32 %v460, %v555
    %v557 = vpop.f32.mrb[0].mxu0
    %558 = vmatprep.mubr.bf16.mxu0 0
    %559 = vmatmul.mubr.bf16.gmra.mrb[0].mxu0 %v435
    %v560 = vpop.f32.mrb[0].mxu0
    %v561 = vadd.f32 %v460, %v560
    %v562 = vpop.f32.mrb[0].mxu0
    %v563 = vpop.f32.mrb[0].mxu0
    %v564 = vadd.f32 %v460, %v563
    %v565 = vpop.f32.mrb[0].mxu0
    %566 = vmatprep.mubr.bf16.mxu0 0
    %567 = vmatmul.mubr.bf16.gmra.mrb[0].mxu0 %v436
    %v568 = vpop.f32.mrb[0].mxu0
    %v569 = vadd.f32 %v460, %v568
    %v570 = vpop.f32.mrb[0].mxu0
    %v571 = vpop.f32.mrb[0].mxu0
    %v572 = vadd.f32 %v460, %v571
    %v573 = vpop.f32.mrb[0].mxu0
    %574 = vdwg.mxu0
    %v575 = vxor.u32 %v545, 2147483648
    %v576 = vxor.u32 %v548, 2147483648
    %v577 = vxor.u32 %v553, 2147483648
    %v578 = vxor.u32 %v556, 2147483648
    %v579 = vxor.u32 %v561, 2147483648
    %v580 = vxor.u32 %v564, 2147483648
    %v581 = vxor.u32 %v569, 2147483648
    %v582 = vxor.u32 %v572, 2147483648
    %v583 = vmul.f32 %v575, 1.442695
    %v584 = vpow.pop %v583
    %v585 = vmul.f32 %v576, 1.442695
    %v586 = vpow.pop %v585
    %v587 = vmul.f32 %v577, 1.442695
    %v588 = vpow.pop %v587
    %v589 = vmul.f32 %v578, 1.442695
    %v590 = vpow.pop %v589
    %v591 = vmul.f32 %v579, 1.442695
    %v592 = vpow.pop %v591
    %v593 = vmul.f32 %v580, 1.442695
    %v594 = vpow.pop %v593
    %v595 = vmul.f32 %v581, 1.442695
    %v596 = vpow.pop %v595
    %v597 = vmul.f32 %v582, 1.442695
    %v598 = vpow.pop %v597
    %v599 = vadd.f32 %v584, 1.0
    %v600 = vadd.f32 %v586, 1.0
    %v601 = vadd.f32 %v588, 1.0
    %v602 = vadd.f32 %v590, 1.0
    %v603 = vadd.f32 %v592, 1.0
    %v604 = vadd.f32 %v594, 1.0
    %v605 = vadd.f32 %v596, 1.0
    %v606 = vadd.f32 %v598, 1.0
    %v607 = vrcp.pop %v599
    %v608 = vmul.f32 1.0, %v607
    %v609 = vrcp.pop %v600
    %v610 = vmul.f32 1.0, %v609
    %v611 = vrcp.pop %v601
    %v612 = vmul.f32 1.0, %v611
    %v613 = vrcp.pop %v602
    %v614 = vmul.f32 1.0, %v613
    %v615 = vrcp.pop %v603
    %v616 = vmul.f32 1.0, %v615
    %v617 = vrcp.pop %v604
    %v618 = vmul.f32 1.0, %v617
    %v619 = vrcp.pop %v605
    %v620 = vmul.f32 1.0, %v619
    %v621 = vrcp.pop %v606
    %v622 = vmul.f32 1.0, %v621
    %v623 = vmul.f32 %v545, %v608
    %v624 = vmul.f32 %v548, %v610
    %v625 = vmul.f32 %v553, %v612
    %v626 = vmul.f32 %v556, %v614
    %v627 = vmul.f32 %v561, %v616
    %v628 = vmul.f32 %v564, %v618
    %v629 = vmul.f32 %v569, %v620
    %v630 = vmul.f32 %v572, %v622
    %v631 = vpack.c.bf16 %v624, %v623
    %v632 = vpack.c.bf16 %v626, %v625
    %v633 = vpack.c.bf16 %v628, %v627
    %v634 = vpack.c.bf16 %v630, %v629
    %s635 = scalar_lea.vmem %s4, 64
    %v636 = vld [vmem:[%s635] sm:$0xf]
    %v637 = vld [vmem:[%s635 + $0x4] sm:$0xf]
    %v638 = vld [vmem:[%s635 + $0x8] sm:$0xf]
    %v639 = vld [vmem:[%s635 + $0xc] sm:$0xf]
    %v640 = vld [vmem:[%s635 + $0x10] sm:$0xf]
    %v641 = vld [vmem:[%s635 + $0x14] sm:$0xf]
    %v642 = vld [vmem:[%s635 + $0x18] sm:$0xf]
    %v643 = vld [vmem:[%s635 + $0x1c] sm:$0xf]
    %v644 = vld [vmem:[%s635 + $0x20] sm:$0xf]
    %v645 = vld [vmem:[%s635 + $0x24] sm:$0xf]
    %v646 = vld [vmem:[%s635 + $0x28] sm:$0xf]
    %v647 = vld [vmem:[%s635 + $0x2c] sm:$0xf]
    %v648 = vld [vmem:[%s635 + $0x30] sm:$0xf]
    %v649 = vld [vmem:[%s635 + $0x34] sm:$0xf]
    %v650 = vld [vmem:[%s635 + $0x38] sm:$0xf]
    %v651 = vld [vmem:[%s635 + $0x3c] sm:$0xf]
    %s652 = scalar_lea.vmem %s5, 1
    %v653 = vld [vmem:[%s652] sm:$0x1]
    %v655 = vlaneseq
    %v656 = vshrl.u32 %v655, 7
    %v657 = vsub.s32 0, %v656
    %v658 = vrot.slane %v653, %v657
    %v676 = vunpack.c.l.b16 %v636
    %v677 = vunpack.c.l.b16 %v637
    %v678 = vunpack.c.l.b16 %v638
    %v679 = vunpack.c.l.b16 %v639
    %v680 = vunpack.c.l.b16 %v640
    %v681 = vunpack.c.l.b16 %v641
    %v682 = vunpack.c.l.b16 %v642
    %v683 = vunpack.c.l.b16 %v643
    %v684 = vunpack.c.l.b16 %v644
    %v685 = vunpack.c.l.b16 %v645
    %v686 = vunpack.c.l.b16 %v646
    %v687 = vunpack.c.l.b16 %v647
    %v688 = vunpack.c.l.b16 %v648
    %v689 = vunpack.c.l.b16 %v649
    %v690 = vunpack.c.l.b16 %v650
    %v691 = vunpack.c.l.b16 %v651
    %v692 = vpack.c.b16 %v677, %v676
    %v693 = vpack.c.b16 %v679, %v678
    %v694 = vpack.c.b16 %v681, %v680
    %v695 = vpack.c.b16 %v683, %v682
    %v696 = vpack.c.b16 %v685, %v684
    %v697 = vpack.c.b16 %v687, %v686
    %v698 = vpack.c.b16 %v689, %v688
    %v699 = vpack.c.b16 %v691, %v690
    %708 = vmatprep.subr.bf16.mxu0 0
    %709 = vmatpush1.bf16.msra.mxu0 %v692
    %710 = vmatprep.subr.bf16.mxu0 0
    %711 = vmatpush1.bf16.msra.mxu0 %v693
    %712 = vmatprep.subr.bf16.mxu0 0
    %713 = vmatpush1.bf16.msra.mxu0 %v694
    %714 = vmatprep.subr.bf16.mxu0 0
    %715 = vmatpush1.bf16.msra.mxu0 %v695
    %716 = vmatprep.subr.bf16.mxu0 0
    %717 = vmatpush1.bf16.msra.mxu0 %v696
    %718 = vmatprep.subr.bf16.mxu0 0
    %719 = vmatpush1.bf16.msra.mxu0 %v697
    %720 = vmatprep.subr.bf16.mxu0 0
    %721 = vmatpush1.bf16.msra.mxu0 %v698
    %722 = vmatprep.subr.bf16.mxu0 0
    %723 = vmatpush1.bf16.msra.mxu0 %v699
    %724 = vmatprep.subr.bf16.mxu0 0
    %725 = vmatpush1.bf16.msra.mxu0 0
    %726 = vmatprep.subr.bf16.mxu0 0
    %727 = vmatpush1.bf16.msra.mxu0 0
    %728 = vmatprep.subr.bf16.mxu0 0
    %729 = vmatpush1.bf16.msra.mxu0 0
    %730 = vmatprep.subr.bf16.mxu0 0
    %731 = vmatpush1.bf16.msra.mxu0 0
    %732 = vmatprep.subr.bf16.mxu0 0
    %733 = vmatpush1.bf16.msra.mxu0 0
    %734 = vmatprep.subr.bf16.mxu0 0
    %735 = vmatpush1.bf16.msra.mxu0 0
    %736 = vmatprep.subr.bf16.mxu0 0
    %737 = vmatpush1.bf16.msra.mxu0 0
    %738 = vmatprep.subr.bf16.mxu0 0
    %739 = vmatpush1.bf16.msra.mxu0 0
    %740 = vmatprep.mubr.bf16.mxu0 0
    %741 = vmatmul.mubr.bf16.gmra.mrb[0].mxu0 %v631
    %v742 = vpop.f32.mrb[0].mxu0
    %v743 = vadd.f32 %v658, %v742
    %v744 = vpop.f32.mrb[0].mxu0
    %v745 = vpop.f32.mrb[0].mxu0
    %v746 = vadd.f32 %v658, %v745
    %v747 = vpop.f32.mrb[0].mxu0
    %748 = vmatprep.mubr.bf16.mxu0 0
    %749 = vmatmul.mubr.bf16.gmra.mrb[0].mxu0 %v632
    %v750 = vpop.f32.mrb[0].mxu0
    %v751 = vadd.f32 %v658, %v750
    %v752 = vpop.f32.mrb[0].mxu0
    %v753 = vpop.f32.mrb[0].mxu0
    %v754 = vadd.f32 %v658, %v753
    %v755 = vpop.f32.mrb[0].mxu0
    %756 = vmatprep.mubr.bf16.mxu0 0
    %757 = vmatmul.mubr.bf16.gmra.mrb[0].mxu0 %v633
    %v758 = vpop.f32.mrb[0].mxu0
    %v759 = vadd.f32 %v658, %v758
    %v760 = vpop.f32.mrb[0].mxu0
    %v761 = vpop.f32.mrb[0].mxu0
    %v762 = vadd.f32 %v658, %v761
    %v763 = vpop.f32.mrb[0].mxu0
    %764 = vmatprep.mubr.bf16.mxu0 0
    %765 = vmatmul.mubr.bf16.gmra.mrb[0].mxu0 %v634
    %v766 = vpop.f32.mrb[0].mxu0
    %v767 = vadd.f32 %v658, %v766
    %v768 = vpop.f32.mrb[0].mxu0
    %v769 = vpop.f32.mrb[0].mxu0
    %v770 = vadd.f32 %v658, %v769
    %v771 = vpop.f32.mrb[0].mxu0
    %772 = vdwg.mxu0
    %v773 = vxor.u32 %v743, 2147483648
    %v774 = vxor.u32 %v746, 2147483648
    %v775 = vxor.u32 %v751, 2147483648
    %v776 = vxor.u32 %v754, 2147483648
    %v777 = vxor.u32 %v759, 2147483648
    %v778 = vxor.u32 %v762, 2147483648
    %v779 = vxor.u32 %v767, 2147483648
    %v780 = vxor.u32 %v770, 2147483648
    %v781 = vmul.f32 %v773, 1.442695
    %v782 = vpow.pop %v781
    %v783 = vmul.f32 %v774, 1.442695
    %v784 = vpow.pop %v783
    %v785 = vmul.f32 %v775, 1.442695
    %v786 = vpow.pop %v785
    %v787 = vmul.f32 %v776, 1.442695
    %v788 = vpow.pop %v787
    %v789 = vmul.f32 %v777, 1.442695
    %v790 = vpow.pop %v789
    %v791 = vmul.f32 %v778, 1.442695
    %v792 = vpow.pop %v791
    %v793 = vmul.f32 %v779, 1.442695
    %v794 = vpow.pop %v793
    %v795 = vmul.f32 %v780, 1.442695
    %v796 = vpow.pop %v795
    %v797 = vadd.f32 %v782, 1.0
    %v798 = vadd.f32 %v784, 1.0
    %v799 = vadd.f32 %v786, 1.0
    %v800 = vadd.f32 %v788, 1.0
    %v801 = vadd.f32 %v790, 1.0
    %v802 = vadd.f32 %v792, 1.0
    %v803 = vadd.f32 %v794, 1.0
    %v804 = vadd.f32 %v796, 1.0
    %v805 = vrcp.pop %v797
    %v806 = vmul.f32 1.0, %v805
    %v807 = vrcp.pop %v798
    %v808 = vmul.f32 1.0, %v807
    %v809 = vrcp.pop %v799
    %v810 = vmul.f32 1.0, %v809
    %v811 = vrcp.pop %v800
    %v812 = vmul.f32 1.0, %v811
    %v813 = vrcp.pop %v801
    %v814 = vmul.f32 1.0, %v813
    %v815 = vrcp.pop %v802
    %v816 = vmul.f32 1.0, %v815
    %v817 = vrcp.pop %v803
    %v818 = vmul.f32 1.0, %v817
    %v819 = vrcp.pop %v804
    %v820 = vmul.f32 1.0, %v819
    %v821 = vmul.f32 %v743, %v806
    %v822 = vmul.f32 %v746, %v808
    %v823 = vmul.f32 %v751, %v810
    %v824 = vmul.f32 %v754, %v812
    %v825 = vmul.f32 %v759, %v814
    %v826 = vmul.f32 %v762, %v816
    %v827 = vmul.f32 %v767, %v818
    %v828 = vmul.f32 %v770, %v820
    %v829 = vadd.f32 %v425, %v821
    %v830 = vadd.f32 %v426, %v822
    %v831 = vadd.f32 %v427, %v823
    %v832 = vadd.f32 %v428, %v824
    %v833 = vadd.f32 %v429, %v825
    %v834 = vadd.f32 %v430, %v826
    %v835 = vadd.f32 %v431, %v827
    %v836 = vadd.f32 %v432, %v828
    %v837 = vld [vmem:[%s1] sm:$0xff]
    %v838 = vld [vmem:[%s1 + $0x8] sm:$0xff]
    %v839 = vld [vmem:[%s1 + $0x10] sm:$0xff]
    %v840 = vld [vmem:[%s1 + $0x18] sm:$0xff]
    %v841 = vld [vmem:[%s1 + $0x20] sm:$0xff]
    %v842 = vld [vmem:[%s1 + $0x28] sm:$0xff]
    %v843 = vld [vmem:[%s1 + $0x30] sm:$0xff]
    %v844 = vld [vmem:[%s1 + $0x38] sm:$0xff]
    %v845 = vadd.f32 %v829, %v837
    %v846 = vadd.f32 %v830, %v838
    %v847 = vadd.f32 %v831, %v839
    %v848 = vadd.f32 %v832, %v840
    %v849 = vadd.f32 %v833, %v841
    %v850 = vadd.f32 %v834, %v842
    %v851 = vadd.f32 %v835, %v843
    %v852 = vadd.f32 %v836, %v844
    %853 = vst [vmem:[#allocation2] sm:$0xff] %v845
    %854 = vst [vmem:[#allocation2 + $0x8] sm:$0xff] %v846
    %855 = vst [vmem:[#allocation2 + $0x10] sm:$0xff] %v847
    %856 = vst [vmem:[#allocation2 + $0x18] sm:$0xff] %v848
    %857 = vst [vmem:[#allocation2 + $0x20] sm:$0xff] %v849
    %858 = vst [vmem:[#allocation2 + $0x28] sm:$0xff] %v850
    %859 = vst [vmem:[#allocation2 + $0x30] sm:$0xff] %v851
    %860 = vst [vmem:[#allocation2 + $0x38] sm:$0xff] %v852
    // Predicated region
    $region26: #{interaction_block_forward.5} parent=1 // pred_check
      _
    $region27: #{interaction_block_forward.5} parent=1 // pred_check_branch
      %862 = sbr.rel (0) target = $region29
    $region28: #{interaction_block_forward.5} parent=1 // pred_region
      %s864 = ssub.s32 1024, 1024
      %865 = vsyncadd [#allocation3], %s864
      %s866 = sshll.u32 [#allocation2], 4
      %s867 = int_to_ptr.vmem [resolvable:$true] %s866
      %872 = dma.vmem_to_hbm [thread:$0]  %s867, 1024, %s6, [#allocation3], 128, 128, 8
    $region29: #{interaction_block_forward.5} parent=1 // pred_fallthru
      _
    // Predicated region
    $region30: #{interaction_block_forward.5} parent=1 // pred_check
      _
    $region31: #{interaction_block_forward.5} parent=1 // pred_check_branch
      %874 = sbr.rel (0) target = $region33
    $region32: #{interaction_block_forward.5} parent=1 // pred_region
      %875 = dma.done [#allocation3], 1024
    $region33: #{interaction_block_forward.5} parent=1 // pred_fallthru
      _
    %876 = vsyncpa [#allocation3], 1

</llo_original>
